<compile_context>
chip_gen: v7x
topology: tpu7x:2x2x1
jax: 0.10.0
libtpu: 0.0.40
codegen_flags: <defaults>
</compile_context>

<pallas_src>
import functools

import jax
import jax.numpy as jnp
from jax.experimental import pallas as pl
from jax.experimental.pallas import tpu as pltpu


def _round_up(n: int, m: int) -> int:
    return ((n + m - 1) // m) * m


# ----------------------------------------------------------------------------
# Pallas kernel: one batch tile through the whole 5-layer MLP.
# ----------------------------------------------------------------------------
def critic_kernel(x_ref,
                  w1_ref, b1_ref,
                  w2_ref, b2_ref,
                  w3_ref, b3_ref,
                  w4_ref, b4_ref,
                  w5_ref, b5_ref,
                  o_ref):
    h = x_ref[...]  # (TM, in_dim) f32
    layers = ((w1_ref, b1_ref, True),
              (w2_ref, b2_ref, True),
              (w3_ref, b3_ref, True),
              (w4_ref, b4_ref, True),
              (w5_ref, b5_ref, False))
    for w_ref, b_ref, relu in layers:
        # bf16 x bf16 MXU matmul with f32 accumulation; bias/ReLU in f32.
        h = jnp.dot(h.astype(jnp.bfloat16), w_ref[...],
                    preferred_element_type=jnp.float32) + b_ref[...]
        if relu:
            h = jnp.maximum(h, 0.0)
    o_ref[...] = h


# ----------------------------------------------------------------------------
# Wrapper: grid over the batch, parameters resident in VMEM.
# ----------------------------------------------------------------------------
def critic_pallas(x, padded_params, *, tm=128):
    """x: (B, in_dim) f32 with B a multiple of tm. Returns (B, out_pad) f32."""
    b_sz, in_dim = x.shape
    out_pad = padded_params[-1][0].shape[1]
    assert b_sz % tm == 0

    flat_args = [x]
    in_specs = [pl.BlockSpec((tm, in_dim), lambda i: (i, 0))]
    for (w, b) in padded_params:
        flat_args.append(w)
        flat_args.append(b)
        # Constant index maps -> weights/biases fetched once, reused per tile.
        in_specs.append(pl.BlockSpec(w.shape, lambda i: (0, 0)))
        in_specs.append(pl.BlockSpec(b.shape, lambda i: (0, 0)))

    return pl.pallas_call(
        critic_kernel,
        out_shape=jax.ShapeDtypeStruct((b_sz, out_pad), jnp.float32),
        grid=(b_sz // tm,),
        in_specs=in_specs,
        out_specs=pl.BlockSpec((tm, out_pad), lambda i: (i, 0)),
        compiler_params=pltpu.CompilerParams(
            dimension_semantics=("parallel",)),
    )(*flat_args)


def critic_forward(x, padded_params, *, out_dim, tm=128):
    """Critic.forward: x (B, in_dim) -> (B, out_dim)."""
    x = x.astype(jnp.float32)
    b_orig = x.shape[0]
    b_pad = _round_up(b_orig, tm)
    if b_pad != b_orig:
        x = jnp.pad(x, ((0, b_pad - b_orig), (0, 0)))
    out = critic_pallas(x, padded_params, tm=tm)
    return out[:b_orig, :out_dim]


# ----------------------------------------------------------------------------
# Parameter construction (matches Critic.init_weights: bias=0, W ~ U(-0.1,0.1))
# and TPU-friendly padding / dtype conversion.
# ----------------------------------------------------------------------------
def init_critic_params(key, in_dim, out_dim, hidden_dim):
    dims = [in_dim] + list(hidden_dim) + [out_dim]
    params = []
    for i in range(len(dims) - 1):
        key, sub = jax.random.split(key)
        # PyTorch nn.Linear stores (out, in); we store (in, out) for x @ W.
        w = jax.random.uniform(sub, (dims[i], dims[i + 1]),
                               minval=-0.1, maxval=0.1, dtype=jnp.float32)
        b = jnp.zeros((dims[i + 1],), jnp.float32)
        params.append((w, b))
    return params


def pad_params_for_tpu(params):
    """Zero-pad lane dims to multiples of 128; weights -> bf16, biases f32.

    Padding is exact: padded output columns see zero weights and zero bias, so
    they stay 0 through ReLU, and padded weight rows only ever multiply those
    zero activation columns.
    """
    padded = []
    prev_dim = params[0][0].shape[0]  # input feature dim left unpadded
    for (w, b) in params:
        fan_in, fan_out = w.shape
        out_p = _round_up(fan_out, 128)
        w_p = jnp.zeros((prev_dim, out_p), jnp.float32).at[:fan_in, :fan_out].set(w)
        b_p = jnp.zeros((1, out_p), jnp.float32).at[0, :fan_out].set(b)
        padded.append((w_p.astype(jnp.bfloat16), b_p))
        prev_dim = out_p
    return padded


# Pure-JAX reference (same bf16-weight / f32-accumulate precision as kernel).
def critic_ref(x, padded_params, out_dim):
    h = x.astype(jnp.float32)
    n = len(padded_params)
    for i, (w, b) in enumerate(padded_params):
        h = jnp.dot(h.astype(jnp.bfloat16), w,
                    preferred_element_type=jnp.float32) + b
        if i < n - 1:
            h = jnp.maximum(h, 0.0)
    return h[:, :out_dim]


if __name__ == "__main__":
    in_dim, out_dim = 12, 1            # e.g. state_dim=8 + action_dim=4
    hidden_dim = [256, 64, 256, 64]    # module default
    batch = 256                        # two 128-row tiles -> grid=(2,)

    key = jax.random.PRNGKey(0)
    k_params, k_x = jax.random.split(key)

    params = init_critic_params(k_params, in_dim, out_dim, hidden_dim)
    padded_params = pad_params_for_tpu(params)

    x = jax.random.normal(k_x, (batch, in_dim), jnp.float32)

    fwd = jax.jit(functools.partial(critic_forward, out_dim=out_dim, tm=128))
    out = fwd(x, padded_params)
    out = jax.block_until_ready(out)

    ref = critic_ref(x, padded_params, out_dim)
    assert out.shape == (batch, out_dim), out.shape
    assert jnp.allclose(out, ref, atol=1e-4, rtol=1e-4), (
        float(jnp.max(jnp.abs(out - ref))))

    print("KERNEL_OK")
</pallas_src>

<mosaic_0001>
module attributes {stable_mosaic.version = 11 : i64} {
  func.func @critic_kernel(%arg0: i32, %arg1: memref<128x12xf32, #tpu.memory_space<vmem>>, %arg2: memref<12x256xbf16, #tpu.memory_space<vmem>>, %arg3: memref<1x256xf32, #tpu.memory_space<vmem>>, %arg4: memref<256x128xbf16, #tpu.memory_space<vmem>>, %arg5: memref<1x128xf32, #tpu.memory_space<vmem>>, %arg6: memref<128x256xbf16, #tpu.memory_space<vmem>>, %arg7: memref<1x256xf32, #tpu.memory_space<vmem>>, %arg8: memref<256x128xbf16, #tpu.memory_space<vmem>>, %arg9: memref<1x128xf32, #tpu.memory_space<vmem>>, %arg10: memref<128x128xbf16, #tpu.memory_space<vmem>>, %arg11: memref<1x128xf32, #tpu.memory_space<vmem>>, %arg12: memref<128x128xf32, #tpu.memory_space<vmem>>) attributes {dimension_semantics = [#tpu.dimension_semantics<parallel>], iteration_bounds = array<i64: 2>, scalar_prefetch = 0 : i64, scratch_operands = 0 : i64, tpu.core_type = #tpu.core_type<tc>, window_params = [{transform_indices = @transform_0, window_bounds = array<i64: 128, 12>}, {pipeline_mode = #tpu.pipeline_mode<synchronous>, transform_indices = @transform_1, window_bounds = array<i64: 12, 256>}, {pipeline_mode = #tpu.pipeline_mode<synchronous>, transform_indices = @transform_2, window_bounds = array<i64: 1, 256>}, {pipeline_mode = #tpu.pipeline_mode<synchronous>, transform_indices = @transform_3, window_bounds = array<i64: 256, 128>}, {pipeline_mode = #tpu.pipeline_mode<synchronous>, transform_indices = @transform_4, window_bounds = array<i64: 1, 128>}, {pipeline_mode = #tpu.pipeline_mode<synchronous>, transform_indices = @transform_5, window_bounds = array<i64: 128, 256>}, {pipeline_mode = #tpu.pipeline_mode<synchronous>, transform_indices = @transform_6, window_bounds = array<i64: 1, 256>}, {pipeline_mode = #tpu.pipeline_mode<synchronous>, transform_indices = @transform_7, window_bounds = array<i64: 256, 128>}, {pipeline_mode = #tpu.pipeline_mode<synchronous>, transform_indices = @transform_8, window_bounds = array<i64: 1, 128>}, {pipeline_mode = #tpu.pipeline_mode<synchronous>, transform_indices = @transform_9, window_bounds = array<i64: 128, 128>}, {pipeline_mode = #tpu.pipeline_mode<synchronous>, transform_indices = @transform_10, window_bounds = array<i64: 1, 128>}, {transform_indices = @transform_11, window_bounds = array<i64: 128, 128>}]} {
    %c0 = arith.constant 0 : index
    %c0_0 = arith.constant 0 : index
    %0 = vector.load %arg1[%c0, %c0_0] : memref<128x12xf32, #tpu.memory_space<vmem>>, vector<128x12xf32>
    %1 = arith.truncf %0 : vector<128x12xf32> to vector<128x12xbf16>
    %c0_1 = arith.constant 0 : index
    %c0_2 = arith.constant 0 : index
    %2 = vector.load %arg2[%c0_1, %c0_2] : memref<12x256xbf16, #tpu.memory_space<vmem>>, vector<12x256xbf16>
    %cst = arith.constant dense<0.000000e+00> : vector<128x256xf32>
    %3 = tpu.matmul %1, %2, %cst {dimension_numbers = #tpu.dot_dimension_numbers<[1], [0], [0], [1], [0, 0, 1, 1], [], []>} : vector<128x12xbf16>, vector<12x256xbf16>, vector<128x256xf32> -> vector<128x256xf32>
    %c0_3 = arith.constant 0 : index
    %c0_4 = arith.constant 0 : index
    %4 = vector.load %arg3[%c0_3, %c0_4] : memref<1x256xf32, #tpu.memory_space<vmem>>, vector<1x256xf32>
    %5 = vector.broadcast %4 : vector<1x256xf32> to vector<128x256xf32>
    %6 = arith.addf %3, %5 : vector<128x256xf32>
    %cst_5 = arith.constant 0.000000e+00 : f32
    %7 = vector.broadcast %cst_5 : f32 to vector<128x256xf32>
    %8 = arith.maximumf %6, %7 : vector<128x256xf32>
    %9 = arith.truncf %8 : vector<128x256xf32> to vector<128x256xbf16>
    %c0_6 = arith.constant 0 : index
    %c0_7 = arith.constant 0 : index
    %10 = vector.load %arg4[%c0_6, %c0_7] : memref<256x128xbf16, #tpu.memory_space<vmem>>, vector<256x128xbf16>
    %cst_8 = arith.constant dense<0.000000e+00> : vector<128x128xf32>
    %11 = tpu.matmul %9, %10, %cst_8 {dimension_numbers = #tpu.dot_dimension_numbers<[1], [0], [0], [1], [0, 0, 1, 1], [], []>} : vector<128x256xbf16>, vector<256x128xbf16>, vector<128x128xf32> -> vector<128x128xf32>
    %c0_9 = arith.constant 0 : index
    %c0_10 = arith.constant 0 : index
    %12 = vector.load %arg5[%c0_9, %c0_10] : memref<1x128xf32, #tpu.memory_space<vmem>>, vector<1x128xf32>
    %13 = vector.broadcast %12 : vector<1x128xf32> to vector<128x128xf32>
    %14 = arith.addf %11, %13 : vector<128x128xf32>
    %cst_11 = arith.constant 0.000000e+00 : f32
    %15 = vector.broadcast %cst_11 : f32 to vector<128x128xf32>
    %16 = arith.maximumf %14, %15 : vector<128x128xf32>
    %17 = arith.truncf %16 : vector<128x128xf32> to vector<128x128xbf16>
    %c0_12 = arith.constant 0 : index
    %c0_13 = arith.constant 0 : index
    %18 = vector.load %arg6[%c0_12, %c0_13] : memref<128x256xbf16, #tpu.memory_space<vmem>>, vector<128x256xbf16>
    %cst_14 = arith.constant dense<0.000000e+00> : vector<128x256xf32>
    %19 = tpu.matmul %17, %18, %cst_14 {dimension_numbers = #tpu.dot_dimension_numbers<[1], [0], [0], [1], [0, 0, 1, 1], [], []>} : vector<128x128xbf16>, vector<128x256xbf16>, vector<128x256xf32> -> vector<128x256xf32>
    %c0_15 = arith.constant 0 : index
    %c0_16 = arith.constant 0 : index
    %20 = vector.load %arg7[%c0_15, %c0_16] : memref<1x256xf32, #tpu.memory_space<vmem>>, vector<1x256xf32>
    %21 = vector.broadcast %20 : vector<1x256xf32> to vector<128x256xf32>
    %22 = arith.addf %19, %21 : vector<128x256xf32>
    %cst_17 = arith.constant 0.000000e+00 : f32
    %23 = vector.broadcast %cst_17 : f32 to vector<128x256xf32>
    %24 = arith.maximumf %22, %23 : vector<128x256xf32>
    %25 = arith.truncf %24 : vector<128x256xf32> to vector<128x256xbf16>
    %c0_18 = arith.constant 0 : index
    %c0_19 = arith.constant 0 : index
    %26 = vector.load %arg8[%c0_18, %c0_19] : memref<256x128xbf16, #tpu.memory_space<vmem>>, vector<256x128xbf16>
    %cst_20 = arith.constant dense<0.000000e+00> : vector<128x128xf32>
    %27 = tpu.matmul %25, %26, %cst_20 {dimension_numbers = #tpu.dot_dimension_numbers<[1], [0], [0], [1], [0, 0, 1, 1], [], []>} : vector<128x256xbf16>, vector<256x128xbf16>, vector<128x128xf32> -> vector<128x128xf32>
    %c0_21 = arith.constant 0 : index
    %c0_22 = arith.constant 0 : index
    %28 = vector.load %arg9[%c0_21, %c0_22] : memref<1x128xf32, #tpu.memory_space<vmem>>, vector<1x128xf32>
    %29 = vector.broadcast %28 : vector<1x128xf32> to vector<128x128xf32>
    %30 = arith.addf %27, %29 : vector<128x128xf32>
    %cst_23 = arith.constant 0.000000e+00 : f32
    %31 = vector.broadcast %cst_23 : f32 to vector<128x128xf32>
    %32 = arith.maximumf %30, %31 : vector<128x128xf32>
    %33 = arith.truncf %32 : vector<128x128xf32> to vector<128x128xbf16>
    %c0_24 = arith.constant 0 : index
    %c0_25 = arith.constant 0 : index
    %34 = vector.load %arg10[%c0_24, %c0_25] : memref<128x128xbf16, #tpu.memory_space<vmem>>, vector<128x128xbf16>
    %cst_26 = arith.constant dense<0.000000e+00> : vector<128x128xf32>
    %35 = tpu.matmul %33, %34, %cst_26 {dimension_numbers = #tpu.dot_dimension_numbers<[1], [0], [0], [1], [0, 0, 1, 1], [], []>} : vector<128x128xbf16>, vector<128x128xbf16>, vector<128x128xf32> -> vector<128x128xf32>
    %c0_27 = arith.constant 0 : index
    %c0_28 = arith.constant 0 : index
    %36 = vector.load %arg11[%c0_27, %c0_28] : memref<1x128xf32, #tpu.memory_space<vmem>>, vector<1x128xf32>
    %37 = vector.broadcast %36 : vector<1x128xf32> to vector<128x128xf32>
    %38 = arith.addf %35, %37 : vector<128x128xf32>
    %c0_29 = arith.constant 0 : index
    %c0_30 = arith.constant 0 : index
    %39 = vector.load %arg12[%c0_29, %c0_30] : memref<128x128xf32, #tpu.memory_space<vmem>>, vector<128x128xf32>
    tpu.vector_store %arg12[%c0_29, %c0_30], %38 {strides = array<i32>} : memref<128x128xf32, #tpu.memory_space<vmem>>, vector<128x128xf32>,
    return
  }
  func.func @transform_0(%arg0: i32) -> (i32, i32) {
    %c0_i32 = arith.constant 0 : i32
    %c0_i32_0 = arith.constant 0 : i32
    return %arg0, %c0_i32 : i32, i32
  }
  func.func @transform_1(%arg0: i32) -> (i32, i32) {
    %c0_i32 = arith.constant 0 : i32
    %c0_i32_0 = arith.constant 0 : i32
    %c0_i32_1 = arith.constant 0 : i32
    return %c0_i32, %c0_i32_0 : i32, i32
  }
  func.func @transform_2(%arg0: i32) -> (i32, i32) {
    %c0_i32 = arith.constant 0 : i32
    %c0_i32_0 = arith.constant 0 : i32
    %c0_i32_1 = arith.constant 0 : i32
    return %c0_i32, %c0_i32_0 : i32, i32
  }
  func.func @transform_3(%arg0: i32) -> (i32, i32) {
    %c0_i32 = arith.constant 0 : i32
    %c0_i32_0 = arith.constant 0 : i32
    %c0_i32_1 = arith.constant 0 : i32
    return %c0_i32, %c0_i32_0 : i32, i32
  }
  func.func @transform_4(%arg0: i32) -> (i32, i32) {
    %c0_i32 = arith.constant 0 : i32
    %c0_i32_0 = arith.constant 0 : i32
    %c0_i32_1 = arith.constant 0 : i32
    return %c0_i32, %c0_i32_0 : i32, i32
  }
  func.func @transform_5(%arg0: i32) -> (i32, i32) {
    %c0_i32 = arith.constant 0 : i32
    %c0_i32_0 = arith.constant 0 : i32
    %c0_i32_1 = arith.constant 0 : i32
    return %c0_i32, %c0_i32_0 : i32, i32
  }
  func.func @transform_6(%arg0: i32) -> (i32, i32) {
    %c0_i32 = arith.constant 0 : i32
    %c0_i32_0 = arith.constant 0 : i32
    %c0_i32_1 = arith.constant 0 : i32
    return %c0_i32, %c0_i32_0 : i32, i32
  }
  func.func @transform_7(%arg0: i32) -> (i32, i32) {
    %c0_i32 = arith.constant 0 : i32
    %c0_i32_0 = arith.constant 0 : i32
    %c0_i32_1 = arith.constant 0 : i32
    return %c0_i32, %c0_i32_0 : i32, i32
  }
  func.func @transform_8(%arg0: i32) -> (i32, i32) {
    %c0_i32 = arith.constant 0 : i32
    %c0_i32_0 = arith.constant 0 : i32
    %c0_i32_1 = arith.constant 0 : i32
    return %c0_i32, %c0_i32_0 : i32, i32
  }
  func.func @transform_9(%arg0: i32) -> (i32, i32) {
    %c0_i32 = arith.constant 0 : i32
    %c0_i32_0 = arith.constant 0 : i32
    %c0_i32_1 = arith.constant 0 : i32
    return %c0_i32, %c0_i32_0 : i32, i32
  }
  func.func @transform_10(%arg0: i32) -> (i32, i32) {
    %c0_i32 = arith.constant 0 : i32
    %c0_i32_0 = arith.constant 0 : i32
    %c0_i32_1 = arith.constant 0 : i32
    return %c0_i32, %c0_i32_0 : i32, i32
  }
  func.func @transform_11(%arg0: i32) -> (i32, i32) {
    %c0_i32 = arith.constant 0 : i32
    %c0_i32_0 = arith.constant 0 : i32
    return %arg0, %c0_i32 : i32, i32
  }
}

</mosaic_0001>

<llo_original>
// kernel: critic_forward.1
$region0: #{critic_forward.1}
  #allocation0 [shape = 'u32[]', space=smem, size = 0x4, offset = 0x4, fixed_abs, tag = 'smem constant byte address 0x4 - core index']
  #allocation1 [shape = 'u32[144,128]{1,0:T(1,128)}', space=vmem, size = 0x12000, scoped, tag = 'internal scratch']
  %s0 = inlined_call_operand.vmem [shape: f32[256,12], index: 0, kind: input, shape index: {}]
  %s1 = inlined_call_operand.hbm [shape: bf16[12,256], index: 1, kind: input, shape index: {}]
  %s2 = inlined_call_operand.vmem [shape: f32[1,256], index: 2, kind: input, shape index: {}]
  %s3 = inlined_call_operand.vmem [shape: bf16[256,128], index: 3, kind: input, shape index: {}]
  %s4 = inlined_call_operand.hbm [shape: f32[1,128], index: 4, kind: input, shape index: {}]
  %s5 = inlined_call_operand.vmem [shape: bf16[128,256], index: 5, kind: input, shape index: {}]
  %s6 = inlined_call_operand.hbm [shape: f32[1,256], index: 6, kind: input, shape index: {}]
  %s7 = inlined_call_operand.hbm [shape: bf16[256,128], index: 7, kind: input, shape index: {}]
  %s8 = inlined_call_operand.hbm [shape: f32[1,128], index: 8, kind: input, shape index: {}]
  %s9 = inlined_call_operand.vmem [shape: bf16[128,128], index: 9, kind: input, shape index: {}]
  %s10 = inlined_call_operand.vmem [shape: f32[1,128], index: 10, kind: input, shape index: {}]
  %s11 = inlined_call_operand.vmem [shape: f32[256,128], index: 11, kind: output, shape index: {}]
  %s12 = sld [smem:[#allocation0]]
  $region97: #{critic_forward.1} parent=0
    _
  %s14 = ssub.s32 1, %s12
  %s15 = scalar_select 0, %s14, %s12
  $region1: #{critic_forward.1} parent=0
    #allocation2 [shape = 'u8[8192]{0}', space=vmem, size = 0x2000, scoped, tag = 'input window, operand 1, single buffered']
    #allocation3 [shape = 's32[2]{0}', space=sflag, size = 0x8, scoped, tag = 'scoped memory for critic_forward.1']
    #allocation4 [shape = 'u8[512]{0}', space=vmem, size = 0x400, scoped, tag = 'input window, operand 4, single buffered']
    #allocation5 [shape = 's32[1]{0}', space=sflag, size = 0x4, scoped, tag = 'scoped memory for critic_forward.1']
    #allocation6 [shape = 'u8[1024]{0}', space=vmem, size = 0x400, scoped, tag = 'input window, operand 6, single buffered']
    #allocation7 [shape = 'u8[65536]{0}', space=vmem, size = 0x10000, scoped, tag = 'input window, operand 7, single buffered']
    #allocation8 [shape = 's32[1]{0}', space=sflag, size = 0x4, scoped, tag = 'scoped memory for critic_forward.1']
    #allocation9 [shape = 'u8[512]{0}', space=vmem, size = 0x400, scoped, tag = 'input window, operand 8, single buffered']
    %16 = vsyncpa [#allocation3], 0
    %17 = vsyncpa [#allocation5], 0
    %18 = vsyncpa [#allocation8], 0
    loop: start=0, step=1, limit=4
    $region2: #{critic_forward.1} parent=1 // loop_pre_header
      _
    $region3: #{critic_forward.1} parent=1 // loop_header
      %s20 = sphi 0, %s24
      %p21 = scmp.ge.s32.totalorder %s20, 4
      %s30 = sphi 0, %s32
      %s33 = sphi 0, %s30
      %s34 = sphi 0, %s33
      %s50 = sphi 0, %s34
      %s54 = sphi 0, %s54
      %s56 = sphi 0, %s54
      %s57 = sphi 0, %s56
      %s71 = sphi 0, %s57
      %s75 = sphi 0, %s75
      %s77 = sphi 0, %s75
      %s78 = sphi 0, %s77
      %s92 = sphi 0, %s78
      %s96 = sphi 0, %s96
      %s98 = sphi 0, %s96
      %s99 = sphi 0, %s98
      %s113 = sphi 0, %s99
      %s117 = sphi 0, %s117
      %s119 = sphi 0, %s117
      %s120 = sphi 0, %s119
      %s134 = sphi 0, %s120
      %s138 = sphi 0, %s138
      %s140 = sphi 0, %s138
      %s141 = sphi 0, %s140
      %s155 = sphi 0, %s141
      %s159 = sphi 0, %s159
      %s161 = sphi 0, %s159
      %s162 = sphi 0, %s161
      %s176 = sphi 0, %s162
      %s180 = sphi 0, %s180
      %s182 = sphi 0, %s180
      %s183 = sphi 0, %s182
      %s197 = sphi 0, %s183
      %s201 = sphi 0, %s201
      %s203 = sphi 0, %s201
      %s204 = sphi 0, %s203
      %s218 = sphi 0, %s204
      %s222 = sphi 0, %s222
      %s224 = sphi 0, %s222
      %s225 = sphi 0, %s224
      %s239 = sphi 0, %s225
      %s243 = sphi 0, %s243
      %s245 = sphi 0, %s243
      %s246 = sphi 0, %s245
      %s260 = sphi 0, %s246
      %s266 = sphi 0, %s268
      %s269 = sphi 0, %s266
      %s270 = sphi 0, %s269
      %s286 = sphi 0, %s270
    $region4: #{critic_forward.1} parent=1 // loop_header_branch
      %23 = sbr.rel (%p21) target = $region8
    $region5: #{critic_forward.1} parent=1 // loop_body
      %s25 = ssub.s32 %s20, 1
      %s26 = ssub.s32 %s20, 2
      %s27 = sadd.s32 %s20, 1
      %s28 = ssub.s32 %s20, %s27
      %p29 = scmp.eq.s32.totalorder %s28, 0
      %s31 = sadd.s32 %s30, 1
      %s32 = scalar_select %p29, %s30, %s31
      %p35 = pneg %p29
      %p36 = scmp.eq.s32.totalorder %s20, 1
      %p37 = por %p35, %p36
      %p38 = scmp.ne.s32.totalorder %s30, %s33
      %p39 = scmp.eq.s32.totalorder %s20, 0
      %p40 = por %p38, %p39
      %p41 = scmp.ne.s32.totalorder %s30, %s33
      %p42 = scmp.eq.s32.totalorder %s25, 1
      %p43 = por %p41, %p42
      %p44 = scmp.ne.s32.totalorder %s33, %s34
      %p45 = scmp.eq.s32.totalorder %s25, 0
      %p46 = por %p44, %p45
      %p47 = scmp.ne.s32.totalorder %s33, %s34
      %p48 = scmp.eq.s32.totalorder %s26, 1
      %p49 = por %p47, %p48
      %p51 = scmp.ne.s32.totalorder %s34, %s50
      %p52 = scmp.eq.s32.totalorder %s26, 0
      %p53 = por %p51, %p52
      %s55 = sadd.s32 %s54, 1
      %p58 = scmp.eq.s32.totalorder %s20, 1
      %p59 = scmp.ne.s32.totalorder %s54, %s56
      %p60 = scmp.eq.s32.totalorder %s20, 0
      %p61 = por %p59, %p60
      %p62 = scmp.ne.s32.totalorder %s54, %s56
      %p63 = scmp.eq.s32.totalorder %s25, 1
      %p64 = por %p62, %p63
      %p65 = scmp.ne.s32.totalorder %s56, %s57
      %p66 = scmp.eq.s32.totalorder %s25, 0
      %p67 = por %p65, %p66
      %p68 = scmp.ne.s32.totalorder %s56, %s57
      %p69 = scmp.eq.s32.totalorder %s26, 1
      %p70 = por %p68, %p69
      %p72 = scmp.ne.s32.totalorder %s57, %s71
      %p73 = scmp.eq.s32.totalorder %s26, 0
      %p74 = por %p72, %p73
      %s76 = sadd.s32 %s75, 1
      %p79 = scmp.eq.s32.totalorder %s20, 1
      %p80 = scmp.ne.s32.totalorder %s75, %s77
      %p81 = scmp.eq.s32.totalorder %s20, 0
      %p82 = por %p80, %p81
      %p83 = scmp.ne.s32.totalorder %s75, %s77
      %p84 = scmp.eq.s32.totalorder %s25, 1
      %p85 = por %p83, %p84
      %p86 = scmp.ne.s32.totalorder %s77, %s78
      %p87 = scmp.eq.s32.totalorder %s25, 0
      %p88 = por %p86, %p87
      %p89 = scmp.ne.s32.totalorder %s77, %s78
      %p90 = scmp.eq.s32.totalorder %s26, 1
      %p91 = por %p89, %p90
      %p93 = scmp.ne.s32.totalorder %s78, %s92
      %p94 = scmp.eq.s32.totalorder %s26, 0
      %p95 = por %p93, %p94
      %s97 = sadd.s32 %s96, 1
      %p100 = scmp.eq.s32.totalorder %s20, 1
      %p101 = scmp.ne.s32.totalorder %s96, %s98
      %p102 = scmp.eq.s32.totalorder %s20, 0
      %p103 = por %p101, %p102
      %p104 = scmp.ne.s32.totalorder %s96, %s98
      %p105 = scmp.eq.s32.totalorder %s25, 1
      %p106 = por %p104, %p105
      %p107 = scmp.ne.s32.totalorder %s98, %s99
      %p108 = scmp.eq.s32.totalorder %s25, 0
      %p109 = por %p107, %p108
      %p110 = scmp.ne.s32.totalorder %s98, %s99
      %p111 = scmp.eq.s32.totalorder %s26, 1
      %p112 = por %p110, %p111
      %p114 = scmp.ne.s32.totalorder %s99, %s113
      %p115 = scmp.eq.s32.totalorder %s26, 0
      %p116 = por %p114, %p115
      %s118 = sadd.s32 %s117, 1
      %p121 = scmp.eq.s32.totalorder %s20, 1
      %p122 = scmp.ne.s32.totalorder %s117, %s119
      %p123 = scmp.eq.s32.totalorder %s20, 0
      %p124 = por %p122, %p123
      %p125 = scmp.ne.s32.totalorder %s117, %s119
      %p126 = scmp.eq.s32.totalorder %s25, 1
      %p127 = por %p125, %p126
      %p128 = scmp.ne.s32.totalorder %s119, %s120
      %p129 = scmp.eq.s32.totalorder %s25, 0
      %p130 = por %p128, %p129
      %p131 = scmp.ne.s32.totalorder %s119, %s120
      %p132 = scmp.eq.s32.totalorder %s26, 1
      %p133 = por %p131, %p132
      %p135 = scmp.ne.s32.totalorder %s120, %s134
      %p136 = scmp.eq.s32.totalorder %s26, 0
      %p137 = por %p135, %p136
      %s139 = sadd.s32 %s138, 1
      %p142 = scmp.eq.s32.totalorder %s20, 1
      %p143 = scmp.ne.s32.totalorder %s138, %s140
      %p144 = scmp.eq.s32.totalorder %s20, 0
      %p145 = por %p143, %p144
      %p146 = scmp.ne.s32.totalorder %s138, %s140
      %p147 = scmp.eq.s32.totalorder %s25, 1
      %p148 = por %p146, %p147
      %p149 = scmp.ne.s32.totalorder %s140, %s141
      %p150 = scmp.eq.s32.totalorder %s25, 0
      %p151 = por %p149, %p150
      %p152 = scmp.ne.s32.totalorder %s140, %s141
      %p153 = scmp.eq.s32.totalorder %s26, 1
      %p154 = por %p152, %p153
      %p156 = scmp.ne.s32.totalorder %s141, %s155
      %p157 = scmp.eq.s32.totalorder %s26, 0
      %p158 = por %p156, %p157
      %s160 = sadd.s32 %s159, 1
      %p163 = scmp.eq.s32.totalorder %s20, 1
      %p164 = scmp.ne.s32.totalorder %s159, %s161
      %p165 = scmp.eq.s32.totalorder %s20, 0
      %p166 = por %p164, %p165
      %p167 = scmp.ne.s32.totalorder %s159, %s161
      %p168 = scmp.eq.s32.totalorder %s25, 1
      %p169 = por %p167, %p168
      %p170 = scmp.ne.s32.totalorder %s161, %s162
      %p171 = scmp.eq.s32.totalorder %s25, 0
      %p172 = por %p170, %p171
      %p173 = scmp.ne.s32.totalorder %s161, %s162
      %p174 = scmp.eq.s32.totalorder %s26, 1
      %p175 = por %p173, %p174
      %p177 = scmp.ne.s32.totalorder %s162, %s176
      %p178 = scmp.eq.s32.totalorder %s26, 0
      %p179 = por %p177, %p178
      %s181 = sadd.s32 %s180, 1
      %p184 = scmp.eq.s32.totalorder %s20, 1
      %p185 = scmp.ne.s32.totalorder %s180, %s182
      %p186 = scmp.eq.s32.totalorder %s20, 0
      %p187 = por %p185, %p186
      %p188 = scmp.ne.s32.totalorder %s180, %s182
      %p189 = scmp.eq.s32.totalorder %s25, 1
      %p190 = por %p188, %p189
      %p191 = scmp.ne.s32.totalorder %s182, %s183
      %p192 = scmp.eq.s32.totalorder %s25, 0
      %p193 = por %p191, %p192
      %p194 = scmp.ne.s32.totalorder %s182, %s183
      %p195 = scmp.eq.s32.totalorder %s26, 1
      %p196 = por %p194, %p195
      %p198 = scmp.ne.s32.totalorder %s183, %s197
      %p199 = scmp.eq.s32.totalorder %s26, 0
      %p200 = por %p198, %p199
      %s202 = sadd.s32 %s201, 1
      %p205 = scmp.eq.s32.totalorder %s20, 1
      %p206 = scmp.ne.s32.totalorder %s201, %s203
      %p207 = scmp.eq.s32.totalorder %s20, 0
      %p208 = por %p206, %p207
      %p209 = scmp.ne.s32.totalorder %s201, %s203
      %p210 = scmp.eq.s32.totalorder %s25, 1
      %p211 = por %p209, %p210
      %p212 = scmp.ne.s32.totalorder %s203, %s204
      %p213 = scmp.eq.s32.totalorder %s25, 0
      %p214 = por %p212, %p213
      %p215 = scmp.ne.s32.totalorder %s203, %s204
      %p216 = scmp.eq.s32.totalorder %s26, 1
      %p217 = por %p215, %p216
      %p219 = scmp.ne.s32.totalorder %s204, %s218
      %p220 = scmp.eq.s32.totalorder %s26, 0
      %p221 = por %p219, %p220
      %s223 = sadd.s32 %s222, 1
      %p226 = scmp.eq.s32.totalorder %s20, 1
      %p227 = scmp.ne.s32.totalorder %s222, %s224
      %p228 = scmp.eq.s32.totalorder %s20, 0
      %p229 = por %p227, %p228
      %p230 = scmp.ne.s32.totalorder %s222, %s224
      %p231 = scmp.eq.s32.totalorder %s25, 1
      %p232 = por %p230, %p231
      %p233 = scmp.ne.s32.totalorder %s224, %s225
      %p234 = scmp.eq.s32.totalorder %s25, 0
      %p235 = por %p233, %p234
      %p236 = scmp.ne.s32.totalorder %s224, %s225
      %p237 = scmp.eq.s32.totalorder %s26, 1
      %p238 = por %p236, %p237
      %p240 = scmp.ne.s32.totalorder %s225, %s239
      %p241 = scmp.eq.s32.totalorder %s26, 0
      %p242 = por %p240, %p241
      %s244 = sadd.s32 %s243, 1
      %p247 = scmp.eq.s32.totalorder %s20, 1
      %p248 = scmp.ne.s32.totalorder %s243, %s245
      %p249 = scmp.eq.s32.totalorder %s20, 0
      %p250 = por %p248, %p249
      %p251 = scmp.ne.s32.totalorder %s243, %s245
      %p252 = scmp.eq.s32.totalorder %s25, 1
      %p253 = por %p251, %p252
      %p254 = scmp.ne.s32.totalorder %s245, %s246
      %p255 = scmp.eq.s32.totalorder %s25, 0
      %p256 = por %p254, %p255
      %p257 = scmp.ne.s32.totalorder %s245, %s246
      %p258 = scmp.eq.s32.totalorder %s26, 1
      %p259 = por %p257, %p258
      %p261 = scmp.ne.s32.totalorder %s246, %s260
      %p262 = scmp.eq.s32.totalorder %s26, 0
      %p263 = por %p261, %p262
      %s264 = ssub.s32 %s20, %s27
      %p265 = scmp.eq.s32.totalorder %s264, 0
      %s267 = sadd.s32 %s266, 1
      %s268 = scalar_select %p265, %s266, %s267
      %p271 = pneg %p265
      %p272 = scmp.eq.s32.totalorder %s20, 1
      %p273 = por %p271, %p272
      %p274 = scmp.ne.s32.totalorder %s266, %s269
      %p275 = scmp.eq.s32.totalorder %s20, 0
      %p276 = por %p274, %p275
      %p277 = scmp.ne.s32.totalorder %s266, %s269
      %p278 = scmp.eq.s32.totalorder %s25, 1
      %p279 = por %p277, %p278
      %p280 = scmp.ne.s32.totalorder %s269, %s270
      %p281 = scmp.eq.s32.totalorder %s25, 0
      %p282 = por %p280, %p281
      %p283 = scmp.ne.s32.totalorder %s269, %s270
      %p284 = scmp.eq.s32.totalorder %s26, 1
      %p285 = por %p283, %p284
      %p287 = scmp.ne.s32.totalorder %s270, %s286
      %p288 = scmp.eq.s32.totalorder %s26, 0
      %p289 = por %p287, %p288
      %p290 = scmp.le.s32.totalorder 1, %s20
      %p291 = scmp.lt.s32.totalorder %s20, 3
      %p292 = pnand %p290, %p291
      %p293 = pneg %p292
      // Predicated region
      $region9: #{critic_forward.1} parent=5 // pred_check
        _
      $region10: #{critic_forward.1} parent=5 // pred_check_branch
        %295 = sbr.rel (%p292) target = $region12
      $region11: #{critic_forward.1} parent=5 // pred_region
        %s296 = ssub.s32 %s20, 1
        // Predicated region
        $region13: #{critic_forward.1} parent=11 // pred_check
          %p297 = pneg %p67
        $region14: #{critic_forward.1} parent=11 // pred_check_branch
          %299 = sbr.rel (%p297) target = $region16
        $region15: #{critic_forward.1} parent=11 // pred_region
          %s301 = ssub.s32 256, 256
          %302 = vsyncadd [#allocation3], %s301
          %s303 = sshll.u32 [#allocation2], 4
          %s304 = int_to_ptr.vmem [resolvable:$true] %s303
          %309 = dma.hbm_to_vmem [thread:$0]  %s1, 256, %s304, [#allocation3], 128, 128, 8
        $region16: #{critic_forward.1} parent=11 // pred_fallthru
          _
        // Predicated region
        $region17: #{critic_forward.1} parent=11 // pred_check
          %p310 = pneg %p88
        $region18: #{critic_forward.1} parent=11 // pred_check_branch
          %312 = sbr.rel (%p310) target = $region20
        $region19: #{critic_forward.1} parent=11 // pred_region
          _
        $region20: #{critic_forward.1} parent=11 // pred_fallthru
          _
        // Predicated region
        $region21: #{critic_forward.1} parent=11 // pred_check
          %p313 = pneg %p109
        $region22: #{critic_forward.1} parent=11 // pred_check_branch
          %315 = sbr.rel (%p313) target = $region24
        $region23: #{critic_forward.1} parent=11 // pred_region
          _
        $region24: #{critic_forward.1} parent=11 // pred_fallthru
          _
        // Predicated region
        $region25: #{critic_forward.1} parent=11 // pred_check
          %p316 = pneg %p130
        $region26: #{critic_forward.1} parent=11 // pred_check_branch
          %318 = sbr.rel (%p316) target = $region28
        $region27: #{critic_forward.1} parent=11 // pred_region
          %s320 = ssub.s32 16, 16
          %321 = vsyncadd [#allocation5], %s320
          %s323 = sshll.u32 [#allocation4], 4
          %s324 = int_to_ptr.vmem [resolvable:$true] %s323
          %326 = dma.hbm_to_vmem [thread:$0]  %s4, 16, %s324, [#allocation5]
        $region28: #{critic_forward.1} parent=11 // pred_fallthru
          _
        // Predicated region
        $region29: #{critic_forward.1} parent=11 // pred_check
          %p327 = pneg %p151
        $region30: #{critic_forward.1} parent=11 // pred_check_branch
          %329 = sbr.rel (%p327) target = $region32
        $region31: #{critic_forward.1} parent=11 // pred_region
          _
        $region32: #{critic_forward.1} parent=11 // pred_fallthru
          _
        // Predicated region
        $region33: #{critic_forward.1} parent=11 // pred_check
          %p330 = pneg %p172
        $region34: #{critic_forward.1} parent=11 // pred_check_branch
          %332 = sbr.rel (%p330) target = $region36
        $region35: #{critic_forward.1} parent=11 // pred_region
          %s334 = ssub.s32 32, 32
          %335 = vsyncadd [#allocation5], %s334
          %s337 = sshll.u32 [#allocation6], 4
          %s338 = int_to_ptr.vmem [resolvable:$true] %s337
          %340 = dma.hbm_to_vmem [thread:$0]  %s6, 32, %s338, [#allocation5]
        $region36: #{critic_forward.1} parent=11 // pred_fallthru
          _
        // Predicated region
        $region37: #{critic_forward.1} parent=11 // pred_check
          %p341 = pneg %p193
        $region38: #{critic_forward.1} parent=11 // pred_check_branch
          %343 = sbr.rel (%p341) target = $region40
        $region39: #{critic_forward.1} parent=11 // pred_region
          %s345 = ssub.s32 2048, 2048
          %346 = vsyncadd [#allocation8], %s345
          %s347 = sshll.u32 [#allocation7], 4
          %s348 = int_to_ptr.vmem [resolvable:$true] %s347
          %353 = dma.hbm_to_vmem [thread:$0]  %s7, 2048, %s348, [#allocation8], 64, 64, 4
        $region40: #{critic_forward.1} parent=11 // pred_fallthru
          _
        // Predicated region
        $region41: #{critic_forward.1} parent=11 // pred_check
          %p354 = pneg %p214
        $region42: #{critic_forward.1} parent=11 // pred_check_branch
          %356 = sbr.rel (%p354) target = $region44
        $region43: #{critic_forward.1} parent=11 // pred_region
          %s358 = ssub.s32 16, 16
          %359 = vsyncadd [#allocation8], %s358
          %s361 = sshll.u32 [#allocation9], 4
          %s362 = int_to_ptr.vmem [resolvable:$true] %s361
          %364 = dma.hbm_to_vmem [thread:$0]  %s8, 16, %s362, [#allocation8]
        $region44: #{critic_forward.1} parent=11 // pred_fallthru
          _
        // Predicated region
        $region45: #{critic_forward.1} parent=11 // pred_check
          %p365 = pneg %p235
        $region46: #{critic_forward.1} parent=11 // pred_check_branch
          %367 = sbr.rel (%p365) target = $region48
        $region47: #{critic_forward.1} parent=11 // pred_region
          _
        $region48: #{critic_forward.1} parent=11 // pred_fallthru
          _
        // Predicated region
        $region49: #{critic_forward.1} parent=11 // pred_check
          %p368 = pneg %p256
        $region50: #{critic_forward.1} parent=11 // pred_check_branch
          %370 = sbr.rel (%p368) target = $region52
        $region51: #{critic_forward.1} parent=11 // pred_region
          _
        $region52: #{critic_forward.1} parent=11 // pred_fallthru
          _
      $region12: #{critic_forward.1} parent=5 // pred_fallthru
        _
      %p371 = scmp.lt.s32.totalorder %s20, 2
      // Predicated region
      $region53: #{critic_forward.1} parent=5 // pred_check
        %p372 = pneg %p371
      $region54: #{critic_forward.1} parent=5 // pred_check_branch
        %374 = sbr.rel (%p372) target = $region56
      $region55: #{critic_forward.1} parent=5 // pred_region
        // Predicated region
        $region57: #{critic_forward.1} parent=55 // pred_check
          %p375 = pneg %p40
        $region58: #{critic_forward.1} parent=55 // pred_check_branch
          %377 = sbr.rel (%p375) target = $region60
        $region59: #{critic_forward.1} parent=55 // pred_region
          %s378 = smul.u32 16, %s20
          %p379 = scmp.lt.s32.totalorder %s378, 31
          %s380 = scalar_select %p379, %s378, 31
          %s381 = smul.addr %s380, 8
          %s382 = scalar_lea.vmem %s0, %s381
          %s383 = smul.u32 16, %s20
        $region60: #{critic_forward.1} parent=55 // pred_fallthru
          _
      $region56: #{critic_forward.1} parent=5 // pred_fallthru
        _
      %p384 = scmp.le.s32.totalorder 1, %s20
      %p385 = scmp.lt.s32.totalorder %s20, 3
      %p386 = pnand %p384, %p385
      %p387 = pneg %p386
      // Predicated region
      $region61: #{critic_forward.1} parent=5 // pred_check
        _
      $region62: #{critic_forward.1} parent=5 // pred_check_branch
        %389 = sbr.rel (%p386) target = $region64
      $region63: #{critic_forward.1} parent=5 // pred_region
        %s390 = ssub.s32 %s20, 1
        // Predicated region
        $region65: #{critic_forward.1} parent=63 // pred_check
          %p391 = pneg %p67
        $region66: #{critic_forward.1} parent=63 // pred_check_branch
          %393 = sbr.rel (%p391) target = $region68
        $region67: #{critic_forward.1} parent=63 // pred_region
          %394 = dma.done [#allocation3], 256
        $region68: #{critic_forward.1} parent=63 // pred_fallthru
          _
        // Predicated region
        $region69: #{critic_forward.1} parent=63 // pred_check
          %p395 = pneg %p130
        $region70: #{critic_forward.1} parent=63 // pred_check_branch
          %397 = sbr.rel (%p395) target = $region72
        $region71: #{critic_forward.1} parent=63 // pred_region
          %398 = dma.done [#allocation5], 16
        $region72: #{critic_forward.1} parent=63 // pred_fallthru
          _
        // Predicated region
        $region73: #{critic_forward.1} parent=63 // pred_check
          %p399 = pneg %p172
        $region74: #{critic_forward.1} parent=63 // pred_check_branch
          %401 = sbr.rel (%p399) target = $region76
        $region75: #{critic_forward.1} parent=63 // pred_region
          %402 = dma.done [#allocation5], 32
        $region76: #{critic_forward.1} parent=63 // pred_fallthru
          _
        // Predicated region
        $region77: #{critic_forward.1} parent=63 // pred_check
          %p403 = pneg %p193
        $region78: #{critic_forward.1} parent=63 // pred_check_branch
          %405 = sbr.rel (%p403) target = $region80
        $region79: #{critic_forward.1} parent=63 // pred_region
          %406 = dma.done [#allocation8], 2048
        $region80: #{critic_forward.1} parent=63 // pred_fallthru
          _
        // Predicated region
        $region81: #{critic_forward.1} parent=63 // pred_check
          %p407 = pneg %p214
        $region82: #{critic_forward.1} parent=63 // pred_check_branch
          %409 = sbr.rel (%p407) target = $region84
        $region83: #{critic_forward.1} parent=63 // pred_region
          %410 = dma.done [#allocation8], 16
        $region84: #{critic_forward.1} parent=63 // pred_fallthru
          _
        %s411 = smul.u32 16, %s25
        %p412 = scmp.lt.s32.totalorder %s411, 31
        %s413 = scalar_select %p412, %s411, 31
        %s414 = smul.addr %s413, 8
        %s415 = scalar_lea.vmem %s0, %s414
        %p416 = pneg %p46
        %p417 = pneg %p43
        %p418 = pneg %p67
        %p419 = pneg %p64
        %p420 = pneg %p88
        %p421 = pneg %p85
        %p422 = pneg %p109
        %p423 = pneg %p106
        %p424 = pneg %p130
        %p425 = pneg %p127
        %p426 = pneg %p151
        %p427 = pneg %p148
        %p428 = pneg %p172
        %p429 = pneg %p169
        %p430 = pneg %p193
        %p431 = pneg %p190
        %p432 = pneg %p214
        %p433 = pneg %p211
        %p434 = pneg %p235
        %p435 = pneg %p232
        %p436 = pneg %p256
        %p437 = pneg %p253
        %p438 = pneg %p282
        %p439 = pneg %p279
        %s440 = smul.u32 16, %s25
        %p441 = scmp.lt.s32.totalorder %s440, 31
        %s442 = scalar_select %p441, %s440, 31
        %s443 = smul.addr %s442, 8
        %s444 = scalar_lea.vmem %s11, %s443
        %s445 = smul.u32 16, %s25
        %p446 = scmp.lt.s32.totalorder %s445, 31
        %s447 = scalar_select %p446, %s445, 31
        %s448 = smul.addr %s447, 8
        %s449 = scalar_lea.vmem %s0, %s448
        %s450 = smul.u32 16, %s25
        %s451 = smul.u32 16, %s25
        %p452 = scmp.lt.s32.totalorder %s451, 31
        %s453 = scalar_select %p452, %s451, 31
        %s454 = smul.addr %s453, 8
        %s455 = scalar_lea.vmem %s11, %s454
        %s456 = smul.u32 16, %s25
        %v458 = vld [vmem:[%s449] sm:$0xff]
        %v459 = vld [vmem:[%s449 + $0x8] sm:$0xff]
        %v460 = vld [vmem:[%s449 + $0x10] sm:$0xff]
        %v461 = vld [vmem:[%s449 + $0x18] sm:$0xff]
        %v462 = vld [vmem:[%s449 + $0x20] sm:$0xff]
        %v463 = vld [vmem:[%s449 + $0x28] sm:$0xff]
        %v464 = vld [vmem:[%s449 + $0x30] sm:$0xff]
        %v465 = vld [vmem:[%s449 + $0x38] sm:$0xff]
        %v466 = vld [vmem:[%s449 + $0x40] sm:$0xff]
        %v467 = vld [vmem:[%s449 + $0x48] sm:$0xff]
        %v468 = vld [vmem:[%s449 + $0x50] sm:$0xff]
        %v469 = vld [vmem:[%s449 + $0x58] sm:$0xff]
        %v470 = vld [vmem:[%s449 + $0x60] sm:$0xff]
        %v471 = vld [vmem:[%s449 + $0x68] sm:$0xff]
        %v472 = vld [vmem:[%s449 + $0x70] sm:$0xff]
        %v473 = vld [vmem:[%s449 + $0x78] sm:$0xff]
        %v474 = vpack.c.bf16 %v459, %v458
        %v475 = vpack.c.bf16 %v461, %v460
        %v476 = vpack.c.bf16 %v463, %v462
        %v477 = vpack.c.bf16 %v465, %v464
        %v478 = vpack.c.bf16 %v467, %v466
        %v479 = vpack.c.bf16 %v469, %v468
        %v480 = vpack.c.bf16 %v471, %v470
        %v481 = vpack.c.bf16 %v473, %v472
        %v482 = vld [vmem:[#allocation2] sm:$0xff]
        %v483 = vld [vmem:[#allocation2 + $0x8] sm:$0x33]
        %v484 = vld [vmem:[%s2] sm:$0x3]
        %v486 = vlaneseq
        %v487 = vshrl.u32 %v486, 7
        %v488 = vsub.s32 0, %v487
        %v489 = vrot.slane %v484, %v488
        %v490 = vlaneseq
        %v491 = vshrl.u32 %v490, 7
        %v492 = vsub.s32 1, %v491
        %v493 = vrot.slane %v484, %v492
        %v498 = vunpack.c.l.b16 %v482
        %v499 = vunpack.c.h.b16 %v482
        %v500 = vunpack.c.l.b16 %v483
        %v501 = vunpack.c.h.b16 %v483
        %v502 = vpack.c.b16 %v500, %v498
        %v503 = vpack.c.b16 %v501, %v499
        %vm504 = vcmask 97280
        %v506 = vsel %vm504, %v474, 0
        %v509 = vsel %vm504, %v475, 0
        %v512 = vsel %vm504, %v476, 0
        %v515 = vsel %vm504, %v477, 0
        %v518 = vsel %vm504, %v478, 0
        %v521 = vsel %vm504, %v479, 0
        %v524 = vsel %vm504, %v480, 0
        %v527 = vsel %vm504, %v481, 0
        %vm529 = vcmask 1045504
        %v531 = vsel %vm529, %v502, 0
        %v534 = vsel %vm529, %v503, 0
        %536 = vmatprep.subr.bf16.mxu0 %v534
        %537 = vmatpush1.bf16.msra.mxu0 %v531
        %538 = vmatprep.subr.bf16.mxu0 0
        %539 = vmatpush1.bf16.msra.mxu0 0
        %540 = vmatprep.subr.bf16.mxu0 0
        %541 = vmatpush1.bf16.msra.mxu0 0
        %542 = vmatprep.subr.bf16.mxu0 0
        %543 = vmatpush1.bf16.msra.mxu0 0
        %544 = vmatprep.subr.bf16.mxu0 0
        %545 = vmatpush1.bf16.msra.mxu0 0
        %546 = vmatprep.subr.bf16.mxu0 0
        %547 = vmatpush1.bf16.msra.mxu0 0
        %548 = vmatprep.subr.bf16.mxu0 0
        %549 = vmatpush1.bf16.msra.mxu0 0
        %550 = vmatprep.subr.bf16.mxu0 0
        %551 = vmatpush1.bf16.msra.mxu0 0
        %552 = vmatprep.subr.bf16.mxu0 0
        %553 = vmatpush1.bf16.msra.mxu0 0
        %554 = vmatprep.subr.bf16.mxu0 0
        %555 = vmatpush1.bf16.msra.mxu0 0
        %556 = vmatprep.subr.bf16.mxu0 0
        %557 = vmatpush1.bf16.msra.mxu0 0
        %558 = vmatprep.subr.bf16.mxu0 0
        %559 = vmatpush1.bf16.msra.mxu0 0
        %560 = vmatprep.subr.bf16.mxu0 0
        %561 = vmatpush1.bf16.msra.mxu0 0
        %562 = vmatprep.subr.bf16.mxu0 0
        %563 = vmatpush1.bf16.msra.mxu0 0
        %564 = vmatprep.subr.bf16.mxu0 0
        %565 = vmatpush1.bf16.msra.mxu0 0
        %566 = vmatprep.subr.bf16.mxu0 0
        %567 = vmatpush1.bf16.msra.mxu0 0
        %568 = vmatprep.mubr.bf16.mxu0 0
        %569 = vmatmul.mubr.bf16.gmra.mrb[0].mxu0 %v506
        %v570 = vpop.f32.mrb[0].mxu0
        %v571 = vadd.f32 %v489, %v570
        %v572 = vpop.f32.mrb[0].mxu0
        %v573 = vadd.f32 %v493, %v572
        %v574 = vpop.f32.mrb[0].mxu0
        %v575 = vadd.f32 %v489, %v574
        %v576 = vpop.f32.mrb[0].mxu0
        %v577 = vadd.f32 %v493, %v576
        %578 = vmatprep.mubr.bf16.mxu0 0
        %579 = vmatmul.mubr.bf16.gmra.mrb[0].mxu0 %v509
        %v580 = vpop.f32.mrb[0].mxu0
        %v581 = vadd.f32 %v489, %v580
        %v582 = vpop.f32.mrb[0].mxu0
        %v583 = vadd.f32 %v493, %v582
        %v584 = vpop.f32.mrb[0].mxu0
        %v585 = vadd.f32 %v489, %v584
        %v586 = vpop.f32.mrb[0].mxu0
        %v587 = vadd.f32 %v493, %v586
        %588 = vmatprep.mubr.bf16.mxu0 0
        %589 = vmatmul.mubr.bf16.gmra.mrb[0].mxu0 %v512
        %v590 = vpop.f32.mrb[0].mxu0
        %v591 = vadd.f32 %v489, %v590
        %v592 = vpop.f32.mrb[0].mxu0
        %v593 = vadd.f32 %v493, %v592
        %v594 = vpop.f32.mrb[0].mxu0
        %v595 = vadd.f32 %v489, %v594
        %v596 = vpop.f32.mrb[0].mxu0
        %v597 = vadd.f32 %v493, %v596
        %598 = vmatprep.mubr.bf16.mxu0 0
        %599 = vmatmul.mubr.bf16.gmra.mrb[0].mxu0 %v515
        %v600 = vpop.f32.mrb[0].mxu0
        %v601 = vadd.f32 %v489, %v600
        %v602 = vpop.f32.mrb[0].mxu0
        %v603 = vadd.f32 %v493, %v602
        %v604 = vpop.f32.mrb[0].mxu0
        %v605 = vadd.f32 %v489, %v604
        %v606 = vpop.f32.mrb[0].mxu0
        %v607 = vadd.f32 %v493, %v606
        %608 = vmatprep.mubr.bf16.mxu0 0
        %609 = vmatmul.mubr.bf16.gmra.mrb[0].mxu0 %v518
        %v610 = vpop.f32.mrb[0].mxu0
        %v611 = vadd.f32 %v489, %v610
        %v612 = vpop.f32.mrb[0].mxu0
        %v613 = vadd.f32 %v493, %v612
        %v614 = vpop.f32.mrb[0].mxu0
        %v615 = vadd.f32 %v489, %v614
        %v616 = vpop.f32.mrb[0].mxu0
        %v617 = vadd.f32 %v493, %v616
        %618 = vmatprep.mubr.bf16.mxu0 0
        %619 = vmatmul.mubr.bf16.gmra.mrb[0].mxu0 %v521
        %v620 = vpop.f32.mrb[0].mxu0
        %v621 = vadd.f32 %v489, %v620
        %v622 = vpop.f32.mrb[0].mxu0
        %v623 = vadd.f32 %v493, %v622
        %v624 = vpop.f32.mrb[0].mxu0
        %v625 = vadd.f32 %v489, %v624
        %v626 = vpop.f32.mrb[0].mxu0
        %v627 = vadd.f32 %v493, %v626
        %628 = vmatprep.mubr.bf16.mxu0 0
        %629 = vmatmul.mubr.bf16.gmra.mrb[0].mxu0 %v524
        %v630 = vpop.f32.mrb[0].mxu0
        %v631 = vadd.f32 %v489, %v630
        %v632 = vpop.f32.mrb[0].mxu0
        %v633 = vadd.f32 %v493, %v632
        %v634 = vpop.f32.mrb[0].mxu0
        %v635 = vadd.f32 %v489, %v634
        %v636 = vpop.f32.mrb[0].mxu0
        %v637 = vadd.f32 %v493, %v636
        %638 = vmatprep.mubr.bf16.mxu0 0
        %639 = vmatmul.mubr.bf16.gmra.mrb[0].mxu0 %v527
        %v640 = vpop.f32.mrb[0].mxu0
        %v641 = vadd.f32 %v489, %v640
        %v642 = vpop.f32.mrb[0].mxu0
        %v643 = vadd.f32 %v493, %v642
        %v644 = vpop.f32.mrb[0].mxu0
        %v645 = vadd.f32 %v489, %v644
        %v646 = vpop.f32.mrb[0].mxu0
        %v647 = vadd.f32 %v493, %v646
        %648 = vdwg.mxu0
        %v649 = vmax.f32 %v571, 0.0
        %v650 = vmax.f32 %v573, 0.0
        %v651 = vmax.f32 %v575, 0.0
        %v652 = vmax.f32 %v577, 0.0
        %v653 = vmax.f32 %v581, 0.0
        %v654 = vmax.f32 %v583, 0.0
        %v655 = vmax.f32 %v585, 0.0
        %v656 = vmax.f32 %v587, 0.0
        %v657 = vmax.f32 %v591, 0.0
        %v658 = vmax.f32 %v593, 0.0
        %v659 = vmax.f32 %v595, 0.0
        %v660 = vmax.f32 %v597, 0.0
        %v661 = vmax.f32 %v601, 0.0
        %v662 = vmax.f32 %v603, 0.0
        %v663 = vmax.f32 %v605, 0.0
        %v664 = vmax.f32 %v607, 0.0
        %v665 = vmax.f32 %v611, 0.0
        %v666 = vmax.f32 %v613, 0.0
        %v667 = vmax.f32 %v615, 0.0
        %v668 = vmax.f32 %v617, 0.0
        %v669 = vmax.f32 %v621, 0.0
        %v670 = vmax.f32 %v623, 0.0
        %v671 = vmax.f32 %v625, 0.0
        %v672 = vmax.f32 %v627, 0.0
        %v673 = vmax.f32 %v631, 0.0
        %v674 = vmax.f32 %v633, 0.0
        %v675 = vmax.f32 %v635, 0.0
        %v676 = vmax.f32 %v637, 0.0
        %v677 = vmax.f32 %v641, 0.0
        %v678 = vmax.f32 %v643, 0.0
        %v679 = vmax.f32 %v645, 0.0
        %v680 = vmax.f32 %v647, 0.0
        %v681 = vpack.c.bf16 %v651, %v649
        %v682 = vpack.c.bf16 %v652, %v650
        %v683 = vpack.c.bf16 %v655, %v653
        %v684 = vpack.c.bf16 %v656, %v654
        %v685 = vpack.c.bf16 %v659, %v657
        %v686 = vpack.c.bf16 %v660, %v658
        %v687 = vpack.c.bf16 %v663, %v661
        %v688 = vpack.c.bf16 %v664, %v662
        %v689 = vpack.c.bf16 %v667, %v665
        %v690 = vpack.c.bf16 %v668, %v666
        %v691 = vpack.c.bf16 %v671, %v669
        %v692 = vpack.c.bf16 %v672, %v670
        %v693 = vpack.c.bf16 %v675, %v673
        %v694 = vpack.c.bf16 %v676, %v674
        %v695 = vpack.c.bf16 %v679, %v677
        %v696 = vpack.c.bf16 %v680, %v678
        %v697 = vld [vmem:[%s3] sm:$0xf]
        %v698 = vld [vmem:[%s3 + $0x4] sm:$0xf]
        %v699 = vld [vmem:[%s3 + $0x8] sm:$0xf]
        %v700 = vld [vmem:[%s3 + $0xc] sm:$0xf]
        %v701 = vld [vmem:[%s3 + $0x10] sm:$0xf]
        %v702 = vld [vmem:[%s3 + $0x14] sm:$0xf]
        %v703 = vld [vmem:[%s3 + $0x18] sm:$0xf]
        %v704 = vld [vmem:[%s3 + $0x1c] sm:$0xf]
        %v705 = vld [vmem:[%s3 + $0x20] sm:$0xf]
        %v706 = vld [vmem:[%s3 + $0x24] sm:$0xf]
        %v707 = vld [vmem:[%s3 + $0x28] sm:$0xf]
        %v708 = vld [vmem:[%s3 + $0x2c] sm:$0xf]
        %v709 = vld [vmem:[%s3 + $0x30] sm:$0xf]
        %v710 = vld [vmem:[%s3 + $0x34] sm:$0xf]
        %v711 = vld [vmem:[%s3 + $0x38] sm:$0xf]
        %v712 = vld [vmem:[%s3 + $0x3c] sm:$0xf]
        %v713 = vld [vmem:[%s3 + $0x40] sm:$0xf]
        %v714 = vld [vmem:[%s3 + $0x44] sm:$0xf]
        %v715 = vld [vmem:[%s3 + $0x48] sm:$0xf]
        %v716 = vld [vmem:[%s3 + $0x4c] sm:$0xf]
        %v717 = vld [vmem:[%s3 + $0x50] sm:$0xf]
        %v718 = vld [vmem:[%s3 + $0x54] sm:$0xf]
        %v719 = vld [vmem:[%s3 + $0x58] sm:$0xf]
        %v720 = vld [vmem:[%s3 + $0x5c] sm:$0xf]
        %v721 = vld [vmem:[%s3 + $0x60] sm:$0xf]
        %v722 = vld [vmem:[%s3 + $0x64] sm:$0xf]
        %v723 = vld [vmem:[%s3 + $0x68] sm:$0xf]
        %v724 = vld [vmem:[%s3 + $0x6c] sm:$0xf]
        %v725 = vld [vmem:[%s3 + $0x70] sm:$0xf]
        %v726 = vld [vmem:[%s3 + $0x74] sm:$0xf]
        %v727 = vld [vmem:[%s3 + $0x78] sm:$0xf]
        %v728 = vld [vmem:[%s3 + $0x7c] sm:$0xf]
        %v729 = vld [vmem:[#allocation4] sm:$0x1]
        %v731 = vlaneseq
        %v732 = vshrl.u32 %v731, 7
        %v733 = vsub.s32 0, %v732
        %v734 = vrot.slane %v729, %v733
        %v768 = vunpack.c.l.b16 %v697
        %v769 = vunpack.c.l.b16 %v698
        %v770 = vunpack.c.l.b16 %v699
        %v771 = vunpack.c.l.b16 %v700
        %v772 = vunpack.c.l.b16 %v701
        %v773 = vunpack.c.l.b16 %v702
        %v774 = vunpack.c.l.b16 %v703
        %v775 = vunpack.c.l.b16 %v704
        %v776 = vunpack.c.l.b16 %v705
        %v777 = vunpack.c.l.b16 %v706
        %v778 = vunpack.c.l.b16 %v707
        %v779 = vunpack.c.l.b16 %v708
        %v780 = vunpack.c.l.b16 %v709
        %v781 = vunpack.c.l.b16 %v710
        %v782 = vunpack.c.l.b16 %v711
        %v783 = vunpack.c.l.b16 %v712
        %v784 = vunpack.c.l.b16 %v713
        %v785 = vunpack.c.l.b16 %v714
        %v786 = vunpack.c.l.b16 %v715
        %v787 = vunpack.c.l.b16 %v716
        %v788 = vunpack.c.l.b16 %v717
        %v789 = vunpack.c.l.b16 %v718
        %v790 = vunpack.c.l.b16 %v719
        %v791 = vunpack.c.l.b16 %v720
        %v792 = vunpack.c.l.b16 %v721
        %v793 = vunpack.c.l.b16 %v722
        %v794 = vunpack.c.l.b16 %v723
        %v795 = vunpack.c.l.b16 %v724
        %v796 = vunpack.c.l.b16 %v725
        %v797 = vunpack.c.l.b16 %v726
        %v798 = vunpack.c.l.b16 %v727
        %v799 = vunpack.c.l.b16 %v728
        %v800 = vpack.c.b16 %v769, %v768
        %v801 = vpack.c.b16 %v771, %v770
        %v802 = vpack.c.b16 %v773, %v772
        %v803 = vpack.c.b16 %v775, %v774
        %v804 = vpack.c.b16 %v777, %v776
        %v805 = vpack.c.b16 %v779, %v778
        %v806 = vpack.c.b16 %v781, %v780
        %v807 = vpack.c.b16 %v783, %v782
        %v808 = vpack.c.b16 %v785, %v784
        %v809 = vpack.c.b16 %v787, %v786
        %v810 = vpack.c.b16 %v789, %v788
        %v811 = vpack.c.b16 %v791, %v790
        %v812 = vpack.c.b16 %v793, %v792
        %v813 = vpack.c.b16 %v795, %v794
        %v814 = vpack.c.b16 %v797, %v796
        %v815 = vpack.c.b16 %v799, %v798
        %832 = vmatprep.subr.bf16.mxu0 0
        %833 = vmatpush1.bf16.msra.mxu0 %v800
        %834 = vmatprep.subr.bf16.mxu0 0
        %835 = vmatpush1.bf16.msra.mxu0 %v801
        %836 = vmatprep.subr.bf16.mxu0 0
        %837 = vmatpush1.bf16.msra.mxu0 %v802
        %838 = vmatprep.subr.bf16.mxu0 0
        %839 = vmatpush1.bf16.msra.mxu0 %v803
        %840 = vmatprep.subr.bf16.mxu0 0
        %841 = vmatpush1.bf16.msra.mxu0 %v804
        %842 = vmatprep.subr.bf16.mxu0 0
        %843 = vmatpush1.bf16.msra.mxu0 %v805
        %844 = vmatprep.subr.bf16.mxu0 0
        %845 = vmatpush1.bf16.msra.mxu0 %v806
        %846 = vmatprep.subr.bf16.mxu0 0
        %847 = vmatpush1.bf16.msra.mxu0 %v807
        %848 = vmatprep.subr.bf16.mxu0 0
        %849 = vmatpush1.bf16.msra.mxu0 %v808
        %850 = vmatprep.subr.bf16.mxu0 0
        %851 = vmatpush1.bf16.msra.mxu0 %v809
        %852 = vmatprep.subr.bf16.mxu0 0
        %853 = vmatpush1.bf16.msra.mxu0 %v810
        %854 = vmatprep.subr.bf16.mxu0 0
        %855 = vmatpush1.bf16.msra.mxu0 %v811
        %856 = vmatprep.subr.bf16.mxu0 0
        %857 = vmatpush1.bf16.msra.mxu0 %v812
        %858 = vmatprep.subr.bf16.mxu0 0
        %859 = vmatpush1.bf16.msra.mxu0 %v813
        %860 = vmatprep.subr.bf16.mxu0 0
        %861 = vmatpush1.bf16.msra.mxu0 %v814
        %862 = vmatprep.subr.bf16.mxu0 0
        %863 = vmatpush1.bf16.msra.mxu0 %v815
        %864 = vmatprep.mubr.bf16.mxu0 %v682
        %865 = vmatmul.mubr.bf16.gmra.mrb[0].mxu0 %v681
        %v866 = vpop.f32.mrb[0].mxu0
        %v867 = vadd.f32 %v734, %v866
        %v868 = vpop.f32.mrb[0].mxu0
        %v869 = vpop.f32.mrb[0].mxu0
        %v870 = vadd.f32 %v734, %v869
        %v871 = vpop.f32.mrb[0].mxu0
        %872 = vmatprep.mubr.bf16.mxu0 %v684
        %873 = vmatmul.mubr.bf16.gmra.mrb[0].mxu0 %v683
        %v874 = vpop.f32.mrb[0].mxu0
        %v875 = vadd.f32 %v734, %v874
        %v876 = vpop.f32.mrb[0].mxu0
        %v877 = vpop.f32.mrb[0].mxu0
        %v878 = vadd.f32 %v734, %v877
        %v879 = vpop.f32.mrb[0].mxu0
        %880 = vmatprep.mubr.bf16.mxu0 %v686
        %881 = vmatmul.mubr.bf16.gmra.mrb[0].mxu0 %v685
        %v882 = vpop.f32.mrb[0].mxu0
        %v883 = vadd.f32 %v734, %v882
        %v884 = vpop.f32.mrb[0].mxu0
        %v885 = vpop.f32.mrb[0].mxu0
        %v886 = vadd.f32 %v734, %v885
        %v887 = vpop.f32.mrb[0].mxu0
        %888 = vmatprep.mubr.bf16.mxu0 %v688
        %889 = vmatmul.mubr.bf16.gmra.mrb[0].mxu0 %v687
        %v890 = vpop.f32.mrb[0].mxu0
        %v891 = vadd.f32 %v734, %v890
        %v892 = vpop.f32.mrb[0].mxu0
        %v893 = vpop.f32.mrb[0].mxu0
        %v894 = vadd.f32 %v734, %v893
        %v895 = vpop.f32.mrb[0].mxu0
        %896 = vmatprep.mubr.bf16.mxu0 %v690
        %897 = vmatmul.mubr.bf16.gmra.mrb[0].mxu0 %v689
        %v898 = vpop.f32.mrb[0].mxu0
        %v899 = vadd.f32 %v734, %v898
        %v900 = vpop.f32.mrb[0].mxu0
        %v901 = vpop.f32.mrb[0].mxu0
        %v902 = vadd.f32 %v734, %v901
        %v903 = vpop.f32.mrb[0].mxu0
        %904 = vmatprep.mubr.bf16.mxu0 %v692
        %905 = vmatmul.mubr.bf16.gmra.mrb[0].mxu0 %v691
        %v906 = vpop.f32.mrb[0].mxu0
        %v907 = vadd.f32 %v734, %v906
        %v908 = vpop.f32.mrb[0].mxu0
        %v909 = vpop.f32.mrb[0].mxu0
        %v910 = vadd.f32 %v734, %v909
        %v911 = vpop.f32.mrb[0].mxu0
        %912 = vmatprep.mubr.bf16.mxu0 %v694
        %913 = vmatmul.mubr.bf16.gmra.mrb[0].mxu0 %v693
        %v914 = vpop.f32.mrb[0].mxu0
        %v915 = vadd.f32 %v734, %v914
        %v916 = vpop.f32.mrb[0].mxu0
        %v917 = vpop.f32.mrb[0].mxu0
        %v918 = vadd.f32 %v734, %v917
        %v919 = vpop.f32.mrb[0].mxu0
        %920 = vmatprep.mubr.bf16.mxu0 %v696
        %921 = vmatmul.mubr.bf16.gmra.mrb[0].mxu0 %v695
        %v922 = vpop.f32.mrb[0].mxu0
        %v923 = vadd.f32 %v734, %v922
        %v924 = vpop.f32.mrb[0].mxu0
        %v925 = vpop.f32.mrb[0].mxu0
        %v926 = vadd.f32 %v734, %v925
        %v927 = vpop.f32.mrb[0].mxu0
        %928 = vdwg.mxu0
        %v929 = vmax.f32 %v867, 0.0
        %v930 = vmax.f32 %v870, 0.0
        %v931 = vmax.f32 %v875, 0.0
        %v932 = vmax.f32 %v878, 0.0
        %v933 = vmax.f32 %v883, 0.0
        %v934 = vmax.f32 %v886, 0.0
        %v935 = vmax.f32 %v891, 0.0
        %v936 = vmax.f32 %v894, 0.0
        %v937 = vmax.f32 %v899, 0.0
        %v938 = vmax.f32 %v902, 0.0
        %v939 = vmax.f32 %v907, 0.0
        %v940 = vmax.f32 %v910, 0.0
        %v941 = vmax.f32 %v915, 0.0
        %v942 = vmax.f32 %v918, 0.0
        %v943 = vmax.f32 %v923, 0.0
        %v944 = vmax.f32 %v926, 0.0
        %v945 = vpack.c.bf16 %v930, %v929
        %v946 = vpack.c.bf16 %v932, %v931
        %v947 = vpack.c.bf16 %v934, %v933
        %v948 = vpack.c.bf16 %v936, %v935
        %v949 = vpack.c.bf16 %v938, %v937
        %v950 = vpack.c.bf16 %v940, %v939
        %v951 = vpack.c.bf16 %v942, %v941
        %v952 = vpack.c.bf16 %v944, %v943
        %v953 = vld [vmem:[%s5] sm:$0xff]
        %v954 = vld [vmem:[%s5 + $0x8] sm:$0xff]
        %v955 = vld [vmem:[%s5 + $0x10] sm:$0xff]
        %v956 = vld [vmem:[%s5 + $0x18] sm:$0xff]
        %v957 = vld [vmem:[%s5 + $0x20] sm:$0xff]
        %v958 = vld [vmem:[%s5 + $0x28] sm:$0xff]
        %v959 = vld [vmem:[%s5 + $0x30] sm:$0xff]
        %v960 = vld [vmem:[%s5 + $0x38] sm:$0xff]
        %v961 = vld [vmem:[%s5 + $0x40] sm:$0xff]
        %v962 = vld [vmem:[%s5 + $0x48] sm:$0xff]
        %v963 = vld [vmem:[%s5 + $0x50] sm:$0xff]
        %v964 = vld [vmem:[%s5 + $0x58] sm:$0xff]
        %v965 = vld [vmem:[%s5 + $0x60] sm:$0xff]
        %v966 = vld [vmem:[%s5 + $0x68] sm:$0xff]
        %v967 = vld [vmem:[%s5 + $0x70] sm:$0xff]
        %v968 = vld [vmem:[%s5 + $0x78] sm:$0xff]
        %v969 = vld [vmem:[#allocation6] sm:$0x3]
        %v971 = vlaneseq
        %v972 = vshrl.u32 %v971, 7
        %v973 = vsub.s32 0, %v972
        %v974 = vrot.slane %v969, %v973
        %v975 = vlaneseq
        %v976 = vshrl.u32 %v975, 7
        %v977 = vsub.s32 1, %v976
        %v978 = vrot.slane %v969, %v977
        %v997 = vunpack.c.l.b16 %v953
        %v998 = vunpack.c.h.b16 %v953
        %v999 = vunpack.c.l.b16 %v954
        %v1000 = vunpack.c.h.b16 %v954
        %v1001 = vunpack.c.l.b16 %v955
        %v1002 = vunpack.c.h.b16 %v955
        %v1003 = vunpack.c.l.b16 %v956
        %v1004 = vunpack.c.h.b16 %v956
        %v1005 = vunpack.c.l.b16 %v957
        %v1006 = vunpack.c.h.b16 %v957
        %v1007 = vunpack.c.l.b16 %v958
        %v1008 = vunpack.c.h.b16 %v958
        %v1009 = vunpack.c.l.b16 %v959
        %v1010 = vunpack.c.h.b16 %v959
        %v1011 = vunpack.c.l.b16 %v960
        %v1012 = vunpack.c.h.b16 %v960
        %v1013 = vunpack.c.l.b16 %v961
        %v1014 = vunpack.c.h.b16 %v961
        %v1015 = vunpack.c.l.b16 %v962
        %v1016 = vunpack.c.h.b16 %v962
        %v1017 = vunpack.c.l.b16 %v963
        %v1018 = vunpack.c.h.b16 %v963
        %v1019 = vunpack.c.l.b16 %v964
        %v1020 = vunpack.c.h.b16 %v964
        %v1021 = vunpack.c.l.b16 %v965
        %v1022 = vunpack.c.h.b16 %v965
        %v1023 = vunpack.c.l.b16 %v966
        %v1024 = vunpack.c.h.b16 %v966
        %v1025 = vunpack.c.l.b16 %v967
        %v1026 = vunpack.c.h.b16 %v967
        %v1027 = vunpack.c.l.b16 %v968
        %v1028 = vunpack.c.h.b16 %v968
        %v1029 = vpack.c.b16 %v999, %v997
        %v1030 = vpack.c.b16 %v1000, %v998
        %v1031 = vpack.c.b16 %v1003, %v1001
        %v1032 = vpack.c.b16 %v1004, %v1002
        %v1033 = vpack.c.b16 %v1007, %v1005
        %v1034 = vpack.c.b16 %v1008, %v1006
        %v1035 = vpack.c.b16 %v1011, %v1009
        %v1036 = vpack.c.b16 %v1012, %v1010
        %v1037 = vpack.c.b16 %v1015, %v1013
        %v1038 = vpack.c.b16 %v1016, %v1014
        %v1039 = vpack.c.b16 %v1019, %v1017
        %v1040 = vpack.c.b16 %v1020, %v1018
        %v1041 = vpack.c.b16 %v1023, %v1021
        %v1042 = vpack.c.b16 %v1024, %v1022
        %v1043 = vpack.c.b16 %v1027, %v1025
        %v1044 = vpack.c.b16 %v1028, %v1026
        %1061 = vmatprep.subr.bf16.mxu0 %v1030
        %1062 = vmatpush1.bf16.msra.mxu0 %v1029
        %1063 = vmatprep.subr.bf16.mxu0 %v1032
        %1064 = vmatpush1.bf16.msra.mxu0 %v1031
        %1065 = vmatprep.subr.bf16.mxu0 %v1034
        %1066 = vmatpush1.bf16.msra.mxu0 %v1033
        %1067 = vmatprep.subr.bf16.mxu0 %v1036
        %1068 = vmatpush1.bf16.msra.mxu0 %v1035
        %1069 = vmatprep.subr.bf16.mxu0 %v1038
        %1070 = vmatpush1.bf16.msra.mxu0 %v1037
        %1071 = vmatprep.subr.bf16.mxu0 %v1040
        %1072 = vmatpush1.bf16.msra.mxu0 %v1039
        %1073 = vmatprep.subr.bf16.mxu0 %v1042
        %1074 = vmatpush1.bf16.msra.mxu0 %v1041
        %1075 = vmatprep.subr.bf16.mxu0 %v1044
        %1076 = vmatpush1.bf16.msra.mxu0 %v1043
        %1077 = vmatprep.subr.bf16.mxu0 0
        %1078 = vmatpush1.bf16.msra.mxu0 0
        %1079 = vmatprep.subr.bf16.mxu0 0
        %1080 = vmatpush1.bf16.msra.mxu0 0
        %1081 = vmatprep.subr.bf16.mxu0 0
        %1082 = vmatpush1.bf16.msra.mxu0 0
        %1083 = vmatprep.subr.bf16.mxu0 0
        %1084 = vmatpush1.bf16.msra.mxu0 0
        %1085 = vmatprep.subr.bf16.mxu0 0
        %1086 = vmatpush1.bf16.msra.mxu0 0
        %1087 = vmatprep.subr.bf16.mxu0 0
        %1088 = vmatpush1.bf16.msra.mxu0 0
        %1089 = vmatprep.subr.bf16.mxu0 0
        %1090 = vmatpush1.bf16.msra.mxu0 0
        %1091 = vmatprep.subr.bf16.mxu0 0
        %1092 = vmatpush1.bf16.msra.mxu0 0
        %1093 = vmatprep.mubr.bf16.mxu0 0
        %1094 = vmatmul.mubr.bf16.gmra.mrb[0].mxu0 %v945
        %v1095 = vpop.f32.mrb[0].mxu0
        %v1096 = vadd.f32 %v974, %v1095
        %v1097 = vpop.f32.mrb[0].mxu0
        %v1098 = vadd.f32 %v978, %v1097
        %v1099 = vpop.f32.mrb[0].mxu0
        %v1100 = vadd.f32 %v974, %v1099
        %v1101 = vpop.f32.mrb[0].mxu0
        %v1102 = vadd.f32 %v978, %v1101
        %1103 = vmatprep.mubr.bf16.mxu0 0
        %1104 = vmatmul.mubr.bf16.gmra.mrb[0].mxu0 %v946
        %v1105 = vpop.f32.mrb[0].mxu0
        %v1106 = vadd.f32 %v974, %v1105
        %v1107 = vpop.f32.mrb[0].mxu0
        %v1108 = vadd.f32 %v978, %v1107
        %v1109 = vpop.f32.mrb[0].mxu0
        %v1110 = vadd.f32 %v974, %v1109
        %v1111 = vpop.f32.mrb[0].mxu0
        %v1112 = vadd.f32 %v978, %v1111
        %1113 = vmatprep.mubr.bf16.mxu0 0
        %1114 = vmatmul.mubr.bf16.gmra.mrb[0].mxu0 %v947
        %v1115 = vpop.f32.mrb[0].mxu0
        %v1116 = vadd.f32 %v974, %v1115
        %v1117 = vpop.f32.mrb[0].mxu0
        %v1118 = vadd.f32 %v978, %v1117
        %v1119 = vpop.f32.mrb[0].mxu0
        %v1120 = vadd.f32 %v974, %v1119
        %v1121 = vpop.f32.mrb[0].mxu0
        %v1122 = vadd.f32 %v978, %v1121
        %1123 = vmatprep.mubr.bf16.mxu0 0
        %1124 = vmatmul.mubr.bf16.gmra.mrb[0].mxu0 %v948
        %v1125 = vpop.f32.mrb[0].mxu0
        %v1126 = vadd.f32 %v974, %v1125
        %v1127 = vpop.f32.mrb[0].mxu0
        %v1128 = vadd.f32 %v978, %v1127
        %v1129 = vpop.f32.mrb[0].mxu0
        %v1130 = vadd.f32 %v974, %v1129
        %v1131 = vpop.f32.mrb[0].mxu0
        %v1132 = vadd.f32 %v978, %v1131
        %1133 = vmatprep.mubr.bf16.mxu0 0
        %1134 = vmatmul.mubr.bf16.gmra.mrb[0].mxu0 %v949
        %v1135 = vpop.f32.mrb[0].mxu0
        %v1136 = vadd.f32 %v974, %v1135
        %v1137 = vpop.f32.mrb[0].mxu0
        %v1138 = vadd.f32 %v978, %v1137
        %v1139 = vpop.f32.mrb[0].mxu0
        %v1140 = vadd.f32 %v974, %v1139
        %v1141 = vpop.f32.mrb[0].mxu0
        %v1142 = vadd.f32 %v978, %v1141
        %1143 = vmatprep.mubr.bf16.mxu0 0
        %1144 = vmatmul.mubr.bf16.gmra.mrb[0].mxu0 %v950
        %v1145 = vpop.f32.mrb[0].mxu0
        %v1146 = vadd.f32 %v974, %v1145
        %v1147 = vpop.f32.mrb[0].mxu0
        %v1148 = vadd.f32 %v978, %v1147
        %v1149 = vpop.f32.mrb[0].mxu0
        %v1150 = vadd.f32 %v974, %v1149
        %v1151 = vpop.f32.mrb[0].mxu0
        %v1152 = vadd.f32 %v978, %v1151
        %1153 = vmatprep.mubr.bf16.mxu0 0
        %1154 = vmatmul.mubr.bf16.gmra.mrb[0].mxu0 %v951
        %v1155 = vpop.f32.mrb[0].mxu0
        %v1156 = vadd.f32 %v974, %v1155
        %v1157 = vpop.f32.mrb[0].mxu0
        %v1158 = vadd.f32 %v978, %v1157
        %v1159 = vpop.f32.mrb[0].mxu0
        %v1160 = vadd.f32 %v974, %v1159
        %v1161 = vpop.f32.mrb[0].mxu0
        %v1162 = vadd.f32 %v978, %v1161
        %1163 = vmatprep.mubr.bf16.mxu0 0
        %1164 = vmatmul.mubr.bf16.gmra.mrb[0].mxu0 %v952
        %v1165 = vpop.f32.mrb[0].mxu0
        %v1166 = vadd.f32 %v974, %v1165
        %v1167 = vpop.f32.mrb[0].mxu0
        %v1168 = vadd.f32 %v978, %v1167
        %v1169 = vpop.f32.mrb[0].mxu0
        %v1170 = vadd.f32 %v974, %v1169
        %v1171 = vpop.f32.mrb[0].mxu0
        %v1172 = vadd.f32 %v978, %v1171
        %1173 = vdwg.mxu0
        %v1174 = vmax.f32 %v1096, 0.0
        %v1175 = vmax.f32 %v1098, 0.0
        %v1176 = vmax.f32 %v1100, 0.0
        %v1177 = vmax.f32 %v1102, 0.0
        %v1178 = vmax.f32 %v1106, 0.0
        %v1179 = vmax.f32 %v1108, 0.0
        %v1180 = vmax.f32 %v1110, 0.0
        %v1181 = vmax.f32 %v1112, 0.0
        %v1182 = vmax.f32 %v1116, 0.0
        %v1183 = vmax.f32 %v1118, 0.0
        %v1184 = vmax.f32 %v1120, 0.0
        %v1185 = vmax.f32 %v1122, 0.0
        %v1186 = vmax.f32 %v1126, 0.0
        %v1187 = vmax.f32 %v1128, 0.0
        %v1188 = vmax.f32 %v1130, 0.0
        %v1189 = vmax.f32 %v1132, 0.0
        %v1190 = vmax.f32 %v1136, 0.0
        %v1191 = vmax.f32 %v1138, 0.0
        %v1192 = vmax.f32 %v1140, 0.0
        %v1193 = vmax.f32 %v1142, 0.0
        %v1194 = vmax.f32 %v1146, 0.0
        %v1195 = vmax.f32 %v1148, 0.0
        %v1196 = vmax.f32 %v1150, 0.0
        %v1197 = vmax.f32 %v1152, 0.0
        %v1198 = vmax.f32 %v1156, 0.0
        %v1199 = vmax.f32 %v1158, 0.0
        %v1200 = vmax.f32 %v1160, 0.0
        %v1201 = vmax.f32 %v1162, 0.0
        %v1202 = vmax.f32 %v1166, 0.0
        %v1203 = vmax.f32 %v1168, 0.0
        %v1204 = vmax.f32 %v1170, 0.0
        %v1205 = vmax.f32 %v1172, 0.0
        %v1206 = vpack.c.bf16 %v1176, %v1174
        %v1207 = vpack.c.bf16 %v1177, %v1175
        %v1208 = vpack.c.bf16 %v1180, %v1178
        %v1209 = vpack.c.bf16 %v1181, %v1179
        %v1210 = vpack.c.bf16 %v1184, %v1182
        %v1211 = vpack.c.bf16 %v1185, %v1183
        %v1212 = vpack.c.bf16 %v1188, %v1186
        %v1213 = vpack.c.bf16 %v1189, %v1187
        %v1214 = vpack.c.bf16 %v1192, %v1190
        %v1215 = vpack.c.bf16 %v1193, %v1191
        %v1216 = vpack.c.bf16 %v1196, %v1194
        %v1217 = vpack.c.bf16 %v1197, %v1195
        %v1218 = vpack.c.bf16 %v1200, %v1198
        %v1219 = vpack.c.bf16 %v1201, %v1199
        %v1220 = vpack.c.bf16 %v1204, %v1202
        %v1221 = vpack.c.bf16 %v1205, %v1203
        %v1222 = vld [vmem:[#allocation7] sm:$0xf]
        %v1223 = vld [vmem:[#allocation7 + $0x4] sm:$0xf]
        %v1224 = vld [vmem:[#allocation7 + $0x8] sm:$0xf]
        %v1225 = vld [vmem:[#allocation7 + $0xc] sm:$0xf]
        %v1226 = vld [vmem:[#allocation7 + $0x10] sm:$0xf]
        %v1227 = vld [vmem:[#allocation7 + $0x14] sm:$0xf]
        %v1228 = vld [vmem:[#allocation7 + $0x18] sm:$0xf]
        %v1229 = vld [vmem:[#allocation7 + $0x1c] sm:$0xf]
        %v1230 = vld [vmem:[#allocation7 + $0x20] sm:$0xf]
        %v1231 = vld [vmem:[#allocation7 + $0x24] sm:$0xf]
        %v1232 = vld [vmem:[#allocation7 + $0x28] sm:$0xf]
        %v1233 = vld [vmem:[#allocation7 + $0x2c] sm:$0xf]
        %v1234 = vld [vmem:[#allocation7 + $0x30] sm:$0xf]
        %v1235 = vld [vmem:[#allocation7 + $0x34] sm:$0xf]
        %v1236 = vld [vmem:[#allocation7 + $0x38] sm:$0xf]
        %v1237 = vld [vmem:[#allocation7 + $0x3c] sm:$0xf]
        %v1238 = vld [vmem:[#allocation7 + $0x40] sm:$0xf]
        %v1239 = vld [vmem:[#allocation7 + $0x44] sm:$0xf]
        %v1240 = vld [vmem:[#allocation7 + $0x48] sm:$0xf]
        %v1241 = vld [vmem:[#allocation7 + $0x4c] sm:$0xf]
        %v1242 = vld [vmem:[#allocation7 + $0x50] sm:$0xf]
        %v1243 = vld [vmem:[#allocation7 + $0x54] sm:$0xf]
        %v1244 = vld [vmem:[#allocation7 + $0x58] sm:$0xf]
        %v1245 = vld [vmem:[#allocation7 + $0x5c] sm:$0xf]
        %v1246 = vld [vmem:[#allocation7 + $0x60] sm:$0xf]
        %v1247 = vld [vmem:[#allocation7 + $0x64] sm:$0xf]
        %v1248 = vld [vmem:[#allocation7 + $0x68] sm:$0xf]
        %v1249 = vld [vmem:[#allocation7 + $0x6c] sm:$0xf]
        %v1250 = vld [vmem:[#allocation7 + $0x70] sm:$0xf]
        %v1251 = vld [vmem:[#allocation7 + $0x74] sm:$0xf]
        %v1252 = vld [vmem:[#allocation7 + $0x78] sm:$0xf]
        %v1253 = vld [vmem:[#allocation7 + $0x7c] sm:$0xf]
        %v1254 = vld [vmem:[#allocation9] sm:$0x1]
        %v1256 = vlaneseq
        %v1257 = vshrl.u32 %v1256, 7
        %v1258 = vsub.s32 0, %v1257
        %v1259 = vrot.slane %v1254, %v1258
        %v1293 = vunpack.c.l.b16 %v1222
        %v1294 = vunpack.c.l.b16 %v1223
        %v1295 = vunpack.c.l.b16 %v1224
        %v1296 = vunpack.c.l.b16 %v1225
        %v1297 = vunpack.c.l.b16 %v1226
        %v1298 = vunpack.c.l.b16 %v1227
        %v1299 = vunpack.c.l.b16 %v1228
        %v1300 = vunpack.c.l.b16 %v1229
        %v1301 = vunpack.c.l.b16 %v1230
        %v1302 = vunpack.c.l.b16 %v1231
        %v1303 = vunpack.c.l.b16 %v1232
        %v1304 = vunpack.c.l.b16 %v1233
        %v1305 = vunpack.c.l.b16 %v1234
        %v1306 = vunpack.c.l.b16 %v1235
        %v1307 = vunpack.c.l.b16 %v1236
        %v1308 = vunpack.c.l.b16 %v1237
        %v1309 = vunpack.c.l.b16 %v1238
        %v1310 = vunpack.c.l.b16 %v1239
        %v1311 = vunpack.c.l.b16 %v1240
        %v1312 = vunpack.c.l.b16 %v1241
        %v1313 = vunpack.c.l.b16 %v1242
        %v1314 = vunpack.c.l.b16 %v1243
        %v1315 = vunpack.c.l.b16 %v1244
        %v1316 = vunpack.c.l.b16 %v1245
        %v1317 = vunpack.c.l.b16 %v1246
        %v1318 = vunpack.c.l.b16 %v1247
        %v1319 = vunpack.c.l.b16 %v1248
        %v1320 = vunpack.c.l.b16 %v1249
        %v1321 = vunpack.c.l.b16 %v1250
        %v1322 = vunpack.c.l.b16 %v1251
        %v1323 = vunpack.c.l.b16 %v1252
        %v1324 = vunpack.c.l.b16 %v1253
        %v1325 = vpack.c.b16 %v1294, %v1293
        %v1326 = vpack.c.b16 %v1296, %v1295
        %v1327 = vpack.c.b16 %v1298, %v1297
        %v1328 = vpack.c.b16 %v1300, %v1299
        %v1329 = vpack.c.b16 %v1302, %v1301
        %v1330 = vpack.c.b16 %v1304, %v1303
        %v1331 = vpack.c.b16 %v1306, %v1305
        %v1332 = vpack.c.b16 %v1308, %v1307
        %v1333 = vpack.c.b16 %v1310, %v1309
        %v1334 = vpack.c.b16 %v1312, %v1311
        %v1335 = vpack.c.b16 %v1314, %v1313
        %v1336 = vpack.c.b16 %v1316, %v1315
        %v1337 = vpack.c.b16 %v1318, %v1317
        %v1338 = vpack.c.b16 %v1320, %v1319
        %v1339 = vpack.c.b16 %v1322, %v1321
        %v1340 = vpack.c.b16 %v1324, %v1323
        %1357 = vmatprep.subr.bf16.mxu0 0
        %1358 = vmatpush1.bf16.msra.mxu0 %v1325
        %1359 = vmatprep.subr.bf16.mxu0 0
        %1360 = vmatpush1.bf16.msra.mxu0 %v1326
        %1361 = vmatprep.subr.bf16.mxu0 0
        %1362 = vmatpush1.bf16.msra.mxu0 %v1327
        %1363 = vmatprep.subr.bf16.mxu0 0
        %1364 = vmatpush1.bf16.msra.mxu0 %v1328
        %1365 = vmatprep.subr.bf16.mxu0 0
        %1366 = vmatpush1.bf16.msra.mxu0 %v1329
        %1367 = vmatprep.subr.bf16.mxu0 0
        %1368 = vmatpush1.bf16.msra.mxu0 %v1330
        %1369 = vmatprep.subr.bf16.mxu0 0
        %1370 = vmatpush1.bf16.msra.mxu0 %v1331
        %1371 = vmatprep.subr.bf16.mxu0 0
        %1372 = vmatpush1.bf16.msra.mxu0 %v1332
        %1373 = vmatprep.subr.bf16.mxu0 0
        %1374 = vmatpush1.bf16.msra.mxu0 %v1333
        %1375 = vmatprep.subr.bf16.mxu0 0
        %1376 = vmatpush1.bf16.msra.mxu0 %v1334
        %1377 = vmatprep.subr.bf16.mxu0 0
        %1378 = vmatpush1.bf16.msra.mxu0 %v1335
        %1379 = vmatprep.subr.bf16.mxu0 0
        %1380 = vmatpush1.bf16.msra.mxu0 %v1336
        %1381 = vmatprep.subr.bf16.mxu0 0
        %1382 = vmatpush1.bf16.msra.mxu0 %v1337
        %1383 = vmatprep.subr.bf16.mxu0 0
        %1384 = vmatpush1.bf16.msra.mxu0 %v1338
        %1385 = vmatprep.subr.bf16.mxu0 0
        %1386 = vmatpush1.bf16.msra.mxu0 %v1339
        %1387 = vmatprep.subr.bf16.mxu0 0
        %1388 = vmatpush1.bf16.msra.mxu0 %v1340
        %1389 = vmatprep.mubr.bf16.mxu0 %v1207
        %1390 = vmatmul.mubr.bf16.gmra.mrb[0].mxu0 %v1206
        %v1391 = vpop.f32.mrb[0].mxu0
        %v1392 = vadd.f32 %v1259, %v1391
        %v1393 = vpop.f32.mrb[0].mxu0
        %v1394 = vpop.f32.mrb[0].mxu0
        %v1395 = vadd.f32 %v1259, %v1394
        %v1396 = vpop.f32.mrb[0].mxu0
        %1397 = vmatprep.mubr.bf16.mxu0 %v1209
        %1398 = vmatmul.mubr.bf16.gmra.mrb[0].mxu0 %v1208
        %v1399 = vpop.f32.mrb[0].mxu0
        %v1400 = vadd.f32 %v1259, %v1399
        %v1401 = vpop.f32.mrb[0].mxu0
        %v1402 = vpop.f32.mrb[0].mxu0
        %v1403 = vadd.f32 %v1259, %v1402
        %v1404 = vpop.f32.mrb[0].mxu0
        %1405 = vmatprep.mubr.bf16.mxu0 %v1211
        %1406 = vmatmul.mubr.bf16.gmra.mrb[0].mxu0 %v1210
        %v1407 = vpop.f32.mrb[0].mxu0
        %v1408 = vadd.f32 %v1259, %v1407
        %v1409 = vpop.f32.mrb[0].mxu0
        %v1410 = vpop.f32.mrb[0].mxu0
        %v1411 = vadd.f32 %v1259, %v1410
        %v1412 = vpop.f32.mrb[0].mxu0
        %1413 = vmatprep.mubr.bf16.mxu0 %v1213
        %1414 = vmatmul.mubr.bf16.gmra.mrb[0].mxu0 %v1212
        %v1415 = vpop.f32.mrb[0].mxu0
        %v1416 = vadd.f32 %v1259, %v1415
        %v1417 = vpop.f32.mrb[0].mxu0
        %v1418 = vpop.f32.mrb[0].mxu0
        %v1419 = vadd.f32 %v1259, %v1418
        %v1420 = vpop.f32.mrb[0].mxu0
        %1421 = vmatprep.mubr.bf16.mxu0 %v1215
        %1422 = vmatmul.mubr.bf16.gmra.mrb[0].mxu0 %v1214
        %v1423 = vpop.f32.mrb[0].mxu0
        %v1424 = vadd.f32 %v1259, %v1423
        %v1425 = vpop.f32.mrb[0].mxu0
        %v1426 = vpop.f32.mrb[0].mxu0
        %v1427 = vadd.f32 %v1259, %v1426
        %v1428 = vpop.f32.mrb[0].mxu0
        %1429 = vmatprep.mubr.bf16.mxu0 %v1217
        %1430 = vmatmul.mubr.bf16.gmra.mrb[0].mxu0 %v1216
        %v1431 = vpop.f32.mrb[0].mxu0
        %v1432 = vadd.f32 %v1259, %v1431
        %v1433 = vpop.f32.mrb[0].mxu0
        %v1434 = vpop.f32.mrb[0].mxu0
        %v1435 = vadd.f32 %v1259, %v1434
        %v1436 = vpop.f32.mrb[0].mxu0
        %1437 = vmatprep.mubr.bf16.mxu0 %v1219
        %1438 = vmatmul.mubr.bf16.gmra.mrb[0].mxu0 %v1218
        %v1439 = vpop.f32.mrb[0].mxu0
        %v1440 = vadd.f32 %v1259, %v1439
        %v1441 = vpop.f32.mrb[0].mxu0
        %v1442 = vpop.f32.mrb[0].mxu0
        %v1443 = vadd.f32 %v1259, %v1442
        %v1444 = vpop.f32.mrb[0].mxu0
        %1445 = vmatprep.mubr.bf16.mxu0 %v1221
        %1446 = vmatmul.mubr.bf16.gmra.mrb[0].mxu0 %v1220
        %v1447 = vpop.f32.mrb[0].mxu0
        %v1448 = vadd.f32 %v1259, %v1447
        %v1449 = vpop.f32.mrb[0].mxu0
        %v1450 = vpop.f32.mrb[0].mxu0
        %v1451 = vadd.f32 %v1259, %v1450
        %v1452 = vpop.f32.mrb[0].mxu0
        %1453 = vdwg.mxu0
        %v1454 = vmax.f32 %v1392, 0.0
        %v1455 = vmax.f32 %v1395, 0.0
        %v1456 = vmax.f32 %v1400, 0.0
        %v1457 = vmax.f32 %v1403, 0.0
        %v1458 = vmax.f32 %v1408, 0.0
        %v1459 = vmax.f32 %v1411, 0.0
        %v1460 = vmax.f32 %v1416, 0.0
        %v1461 = vmax.f32 %v1419, 0.0
        %v1462 = vmax.f32 %v1424, 0.0
        %v1463 = vmax.f32 %v1427, 0.0
        %v1464 = vmax.f32 %v1432, 0.0
        %v1465 = vmax.f32 %v1435, 0.0
        %v1466 = vmax.f32 %v1440, 0.0
        %v1467 = vmax.f32 %v1443, 0.0
        %v1468 = vmax.f32 %v1448, 0.0
        %v1469 = vmax.f32 %v1451, 0.0
        %v1470 = vpack.c.bf16 %v1455, %v1454
        %v1471 = vpack.c.bf16 %v1457, %v1456
        %v1472 = vpack.c.bf16 %v1459, %v1458
        %v1473 = vpack.c.bf16 %v1461, %v1460
        %v1474 = vpack.c.bf16 %v1463, %v1462
        %v1475 = vpack.c.bf16 %v1465, %v1464
        %v1476 = vpack.c.bf16 %v1467, %v1466
        %v1477 = vpack.c.bf16 %v1469, %v1468
        %v1478 = vld [vmem:[%s9] sm:$0xf]
        %v1479 = vld [vmem:[%s9 + $0x4] sm:$0xf]
        %v1480 = vld [vmem:[%s9 + $0x8] sm:$0xf]
        %v1481 = vld [vmem:[%s9 + $0xc] sm:$0xf]
        %v1482 = vld [vmem:[%s9 + $0x10] sm:$0xf]
        %v1483 = vld [vmem:[%s9 + $0x14] sm:$0xf]
        %v1484 = vld [vmem:[%s9 + $0x18] sm:$0xf]
        %v1485 = vld [vmem:[%s9 + $0x1c] sm:$0xf]
        %v1486 = vld [vmem:[%s9 + $0x20] sm:$0xf]
        %v1487 = vld [vmem:[%s9 + $0x24] sm:$0xf]
        %v1488 = vld [vmem:[%s9 + $0x28] sm:$0xf]
        %v1489 = vld [vmem:[%s9 + $0x2c] sm:$0xf]
        %v1490 = vld [vmem:[%s9 + $0x30] sm:$0xf]
        %v1491 = vld [vmem:[%s9 + $0x34] sm:$0xf]
        %v1492 = vld [vmem:[%s9 + $0x38] sm:$0xf]
        %v1493 = vld [vmem:[%s9 + $0x3c] sm:$0xf]
        %v1494 = vld [vmem:[%s10] sm:$0x1]
        %v1496 = vlaneseq
        %v1497 = vshrl.u32 %v1496, 7
        %v1498 = vsub.s32 0, %v1497
        %v1499 = vrot.slane %v1494, %v1498
        %v1517 = vunpack.c.l.b16 %v1478
        %v1518 = vunpack.c.l.b16 %v1479
        %v1519 = vunpack.c.l.b16 %v1480
        %v1520 = vunpack.c.l.b16 %v1481
        %v1521 = vunpack.c.l.b16 %v1482
        %v1522 = vunpack.c.l.b16 %v1483
        %v1523 = vunpack.c.l.b16 %v1484
        %v1524 = vunpack.c.l.b16 %v1485
        %v1525 = vunpack.c.l.b16 %v1486
        %v1526 = vunpack.c.l.b16 %v1487
        %v1527 = vunpack.c.l.b16 %v1488
        %v1528 = vunpack.c.l.b16 %v1489
        %v1529 = vunpack.c.l.b16 %v1490
        %v1530 = vunpack.c.l.b16 %v1491
        %v1531 = vunpack.c.l.b16 %v1492
        %v1532 = vunpack.c.l.b16 %v1493
        %v1533 = vpack.c.b16 %v1518, %v1517
        %v1534 = vpack.c.b16 %v1520, %v1519
        %v1535 = vpack.c.b16 %v1522, %v1521
        %v1536 = vpack.c.b16 %v1524, %v1523
        %v1537 = vpack.c.b16 %v1526, %v1525
        %v1538 = vpack.c.b16 %v1528, %v1527
        %v1539 = vpack.c.b16 %v1530, %v1529
        %v1540 = vpack.c.b16 %v1532, %v1531
        %1549 = vmatprep.subr.bf16.mxu0 0
        %1550 = vmatpush1.bf16.msra.mxu0 %v1533
        %1551 = vmatprep.subr.bf16.mxu0 0
        %1552 = vmatpush1.bf16.msra.mxu0 %v1534
        %1553 = vmatprep.subr.bf16.mxu0 0
        %1554 = vmatpush1.bf16.msra.mxu0 %v1535
        %1555 = vmatprep.subr.bf16.mxu0 0
        %1556 = vmatpush1.bf16.msra.mxu0 %v1536
        %1557 = vmatprep.subr.bf16.mxu0 0
        %1558 = vmatpush1.bf16.msra.mxu0 %v1537
        %1559 = vmatprep.subr.bf16.mxu0 0
        %1560 = vmatpush1.bf16.msra.mxu0 %v1538
        %1561 = vmatprep.subr.bf16.mxu0 0
        %1562 = vmatpush1.bf16.msra.mxu0 %v1539
        %1563 = vmatprep.subr.bf16.mxu0 0
        %1564 = vmatpush1.bf16.msra.mxu0 %v1540
        %1565 = vmatprep.subr.bf16.mxu0 0
        %1566 = vmatpush1.bf16.msra.mxu0 0
        %1567 = vmatprep.subr.bf16.mxu0 0
        %1568 = vmatpush1.bf16.msra.mxu0 0
        %1569 = vmatprep.subr.bf16.mxu0 0
        %1570 = vmatpush1.bf16.msra.mxu0 0
        %1571 = vmatprep.subr.bf16.mxu0 0
        %1572 = vmatpush1.bf16.msra.mxu0 0
        %1573 = vmatprep.subr.bf16.mxu0 0
        %1574 = vmatpush1.bf16.msra.mxu0 0
        %1575 = vmatprep.subr.bf16.mxu0 0
        %1576 = vmatpush1.bf16.msra.mxu0 0
        %1577 = vmatprep.subr.bf16.mxu0 0
        %1578 = vmatpush1.bf16.msra.mxu0 0
        %1579 = vmatprep.subr.bf16.mxu0 0
        %1580 = vmatpush1.bf16.msra.mxu0 0
        %1581 = vmatprep.mubr.bf16.mxu0 0
        %1582 = vmatmul.mubr.bf16.gmra.mrb[0].mxu0 %v1470
        %v1583 = vpop.f32.mrb[0].mxu0
        %v1584 = vadd.f32 %v1499, %v1583
        %v1585 = vpop.f32.mrb[0].mxu0
        %v1586 = vpop.f32.mrb[0].mxu0
        %v1587 = vadd.f32 %v1499, %v1586
        %v1588 = vpop.f32.mrb[0].mxu0
        %1589 = vmatprep.mubr.bf16.mxu0 0
        %1590 = vmatmul.mubr.bf16.gmra.mrb[0].mxu0 %v1471
        %v1591 = vpop.f32.mrb[0].mxu0
        %v1592 = vadd.f32 %v1499, %v1591
        %v1593 = vpop.f32.mrb[0].mxu0
        %v1594 = vpop.f32.mrb[0].mxu0
        %v1595 = vadd.f32 %v1499, %v1594
        %v1596 = vpop.f32.mrb[0].mxu0
        %1597 = vmatprep.mubr.bf16.mxu0 0
        %1598 = vmatmul.mubr.bf16.gmra.mrb[0].mxu0 %v1472
        %v1599 = vpop.f32.mrb[0].mxu0
        %v1600 = vadd.f32 %v1499, %v1599
        %v1601 = vpop.f32.mrb[0].mxu0
        %v1602 = vpop.f32.mrb[0].mxu0
        %v1603 = vadd.f32 %v1499, %v1602
        %v1604 = vpop.f32.mrb[0].mxu0
        %1605 = vmatprep.mubr.bf16.mxu0 0
        %1606 = vmatmul.mubr.bf16.gmra.mrb[0].mxu0 %v1473
        %v1607 = vpop.f32.mrb[0].mxu0
        %v1608 = vadd.f32 %v1499, %v1607
        %v1609 = vpop.f32.mrb[0].mxu0
        %v1610 = vpop.f32.mrb[0].mxu0
        %v1611 = vadd.f32 %v1499, %v1610
        %v1612 = vpop.f32.mrb[0].mxu0
        %1613 = vmatprep.mubr.bf16.mxu0 0
        %1614 = vmatmul.mubr.bf16.gmra.mrb[0].mxu0 %v1474
        %v1615 = vpop.f32.mrb[0].mxu0
        %v1616 = vadd.f32 %v1499, %v1615
        %v1617 = vpop.f32.mrb[0].mxu0
        %v1618 = vpop.f32.mrb[0].mxu0
        %v1619 = vadd.f32 %v1499, %v1618
        %v1620 = vpop.f32.mrb[0].mxu0
        %1621 = vmatprep.mubr.bf16.mxu0 0
        %1622 = vmatmul.mubr.bf16.gmra.mrb[0].mxu0 %v1475
        %v1623 = vpop.f32.mrb[0].mxu0
        %v1624 = vadd.f32 %v1499, %v1623
        %v1625 = vpop.f32.mrb[0].mxu0
        %v1626 = vpop.f32.mrb[0].mxu0
        %v1627 = vadd.f32 %v1499, %v1626
        %v1628 = vpop.f32.mrb[0].mxu0
        %1629 = vmatprep.mubr.bf16.mxu0 0
        %1630 = vmatmul.mubr.bf16.gmra.mrb[0].mxu0 %v1476
        %v1631 = vpop.f32.mrb[0].mxu0
        %v1632 = vadd.f32 %v1499, %v1631
        %v1633 = vpop.f32.mrb[0].mxu0
        %v1634 = vpop.f32.mrb[0].mxu0
        %v1635 = vadd.f32 %v1499, %v1634
        %v1636 = vpop.f32.mrb[0].mxu0
        %1637 = vmatprep.mubr.bf16.mxu0 0
        %1638 = vmatmul.mubr.bf16.gmra.mrb[0].mxu0 %v1477
        %v1639 = vpop.f32.mrb[0].mxu0
        %v1640 = vadd.f32 %v1499, %v1639
        %v1641 = vpop.f32.mrb[0].mxu0
        %v1642 = vpop.f32.mrb[0].mxu0
        %v1643 = vadd.f32 %v1499, %v1642
        %v1644 = vpop.f32.mrb[0].mxu0
        %1645 = vdwg.mxu0
        %1646 = vst [vmem:[%s455] sm:$0xff] %v1584
        %1647 = vst [vmem:[%s455 + $0x8] sm:$0xff] %v1587
        %1648 = vst [vmem:[%s455 + $0x10] sm:$0xff] %v1592
        %1649 = vst [vmem:[%s455 + $0x18] sm:$0xff] %v1595
        %1650 = vst [vmem:[%s455 + $0x20] sm:$0xff] %v1600
        %1651 = vst [vmem:[%s455 + $0x28] sm:$0xff] %v1603
        %1652 = vst [vmem:[%s455 + $0x30] sm:$0xff] %v1608
        %1653 = vst [vmem:[%s455 + $0x38] sm:$0xff] %v1611
        %1654 = vst [vmem:[%s455 + $0x40] sm:$0xff] %v1616
        %1655 = vst [vmem:[%s455 + $0x48] sm:$0xff] %v1619
        %1656 = vst [vmem:[%s455 + $0x50] sm:$0xff] %v1624
        %1657 = vst [vmem:[%s455 + $0x58] sm:$0xff] %v1627
        %1658 = vst [vmem:[%s455 + $0x60] sm:$0xff] %v1632
        %1659 = vst [vmem:[%s455 + $0x68] sm:$0xff] %v1635
        %1660 = vst [vmem:[%s455 + $0x70] sm:$0xff] %v1640
        %1661 = vst [vmem:[%s455 + $0x78] sm:$0xff] %v1643
        %s1662 = smul.u32 16, %s25
        %p1663 = scmp.lt.s32.totalorder %s1662, 31
        %s1664 = scalar_select %p1663, %s1662, 31
        %s1665 = smul.addr %s1664, 8
        %s1666 = scalar_lea.vmem %s11, %s1665
        // Predicated region
        $region85: #{critic_forward.1} parent=63 // pred_check
          %p1667 = pneg %p279
        $region86: #{critic_forward.1} parent=63 // pred_check_branch
          %1669 = sbr.rel (%p1667) target = $region88
        $region87: #{critic_forward.1} parent=63 // pred_region
          %s1670 = smul.u32 16, %s25
        $region88: #{critic_forward.1} parent=63 // pred_fallthru
          _
      $region64: #{critic_forward.1} parent=5 // pred_fallthru
        _
      %p1671 = scmp.le.s32.totalorder 2, %s20
      // Predicated region
      $region89: #{critic_forward.1} parent=5 // pred_check
        %p1672 = pneg %p1671
      $region90: #{critic_forward.1} parent=5 // pred_check_branch
        %1674 = sbr.rel (%p1672) target = $region92
      $region91: #{critic_forward.1} parent=5 // pred_region
        %s1675 = ssub.s32 %s20, 2
        // Predicated region
        $region93: #{critic_forward.1} parent=91 // pred_check
          %p1676 = pneg %p285
        $region94: #{critic_forward.1} parent=91 // pred_check_branch
          %1678 = sbr.rel (%p1676) target = $region96
        $region95: #{critic_forward.1} parent=91 // pred_region
          %s1679 = smul.u32 16, %s26
          %p1680 = scmp.lt.s32.totalorder %s1679, 31
          %s1681 = scalar_select %p1680, %s1679, 31
          %s1682 = smul.addr %s1681, 8
          %s1683 = scalar_lea.vmem %s11, %s1682
        $region96: #{critic_forward.1} parent=91 // pred_fallthru
          _
      $region92: #{critic_forward.1} parent=5 // pred_fallthru
        _
    $region6: #{critic_forward.1} parent=1 // loop_footer
      %s24 = sadd.s32 1, %s20
    $region7: #{critic_forward.1} parent=1 // loop_footer_branch
      %19 = sbr.rel target = $region3
    $region8: #{critic_forward.1} parent=1 // loop_exit
      _
    %1684 = vsyncpa [#allocation3], 1
    %s1685 = scalar_lea.sflag [#allocation3], 1
    %1686 = vsyncpa %s1685, 1
    %1687 = vsyncpa [#allocation5], 1
    %1688 = vsyncpa [#allocation8], 1

</llo_original>
